<compile_context>
chip_gen: v7x
topology: tpu7x:2x2x1
jax: 0.10.0
libtpu: 0.0.40
codegen_flags: <defaults>
</compile_context>

<pallas_src>
import jax
import jax.numpy as jnp
from jax.experimental import pallas as pl
from jax.experimental.pallas import tpu as pltpu

_AUG = 8  # augmentation rows (8 keeps f32 sublane alignment); row 0 carries the "1"


# --------------------------------------------------------------------------- #
# Kernel
# --------------------------------------------------------------------------- #
def _multi_mlp_kernel(x_ref, w1_ref, w2_ref, w3_ref, out_ref):
    """One grid step = one block of G networks as block-diagonal matmuls.

    x_ref  : (G, N, d_in)                  f32  natural layout
    w1_ref : (1, G*hidden+A, G*d_in+A)     f32  block-diag W1^T, bias in col G*d_in
    w2_ref : (1, G*hidden+A, G*hidden+A)   f32  block-diag W2^T, bias in col G*hidden
    w3_ref : (1, G*d_out,    G*hidden+A)   f32  block-diag W3^T, bias in col G*hidden
    out_ref: (G*d_out, N)                  f32  lane-dense transposed output
    """
    G, N, d_in = x_ref.shape

    # Stacked transposed activations x^T (G*d_in, N) plus an augmentation block:
    # first augmented row is all ones (feeds the folded bias columns), the other
    # A-1 rows are zero and exist only for 8-row sublane alignment.
    row = jax.lax.broadcasted_iota(jnp.int32, (_AUG, N), 0)
    ones_block = (row == 0).astype(jnp.float32)
    pieces = [x_ref[g, :, :].T for g in range(G)]  # G tiny (d_in, N) XLU transposes
    pieces.append(ones_block)
    xt_aug = jnp.concatenate(pieces, axis=0)       # (G*d_in + A, N)

    w1 = w1_ref[0]
    w2 = w2_ref[0]
    w3 = w3_ref[0]

    # ReLU maps the augmented rows (1, 0, ..., 0) to themselves, so the ones row
    # is propagated through every layer and keeps feeding the folded biases.
    h1 = jnp.maximum(jnp.dot(w1, xt_aug, preferred_element_type=jnp.float32), 0.0)
    h2 = jnp.maximum(jnp.dot(w2, h1, preferred_element_type=jnp.float32), 0.0)
    out_ref[...] = jnp.dot(w3, h2, preferred_element_type=jnp.float32)


# --------------------------------------------------------------------------- #
# One-time parameter preprocessing (hoisted out of the forward path)
# --------------------------------------------------------------------------- #
def _mxu_feature_target():
    # G is chosen so G*hidden ~ matches the MXU width: 256 on v6e/v7x, 128 on v5e.
    try:
        kind = jax.devices()[0].device_kind.lower()
        if "v5e" in kind or "v5 lite" in kind or "v5lite" in kind:
            return 128
    except Exception:
        pass
    return 256


def _default_networks_per_block(num_networks, hidden):
    target = max(1, _mxu_feature_target() // max(int(hidden), 1))
    g = 1
    for cand in range(1, num_networks + 1):
        if num_networks % cand == 0 and cand <= target:
            g = cand
    return g


def prepare_params(params, networks_per_block=None):
    """Build augmented block-diagonal transposed weights.  Call ONCE after params
    are created/updated, not per forward call.

    Per block of G networks and per layer:
        W_aug = [[ blockdiag(W_i^T)   b_stack   0 ],
                 [ 0                  1         0 ],    (pass-through of the ones row)
                 [ 0                  0         0 ]]
    so each layer is a single 2-D MXU matmul and the bias add is free.
    """
    w1, b1, w2, b2, w3, b3 = (params[k] for k in ("w1", "b1", "w2", "b2", "w3", "b3"))
    num_networks, d_in, hidden = w1.shape
    d_out = w3.shape[-1]

    G = (networks_per_block if networks_per_block is not None
         else _default_networks_per_block(num_networks, hidden))
    if num_networks % G != 0:
        raise ValueError(
            f"networks_per_block={G} must evenly divide num_networks={num_networks}")
    nb = num_networks // G
    A = _AUG
    Hb, Dinb, Doutb = G * hidden, G * d_in, G * d_out
    f32 = jnp.float32

    def block_diag(w):  # (nb, G, a, b) -> (nb, G*a, G*b)
        _, _, a, b_ = w.shape
        eye = jnp.eye(G, dtype=f32)
        return jnp.einsum("kgab,gh->kgahb", w.astype(f32), eye).reshape(nb, G * a, G * b_)

    w1bd = block_diag(jnp.swapaxes(w1, 1, 2).reshape(nb, G, hidden, d_in))
    w2bd = block_diag(jnp.swapaxes(w2, 1, 2).reshape(nb, G, hidden, hidden))
    w3bd = block_diag(jnp.swapaxes(w3, 1, 2).reshape(nb, G, d_out, hidden))
    b1s = b1.astype(f32).reshape(nb, Hb)
    b2s = b2.astype(f32).reshape(nb, Hb)
    b3s = b3.astype(f32).reshape(nb, Doutb)

    w1a = jnp.zeros((nb, Hb + A, Dinb + A), f32)
    w1a = w1a.at[:, :Hb, :Dinb].set(w1bd)
    w1a = w1a.at[:, :Hb, Dinb].set(b1s)
    w1a = w1a.at[:, Hb, Dinb].set(1.0)      # propagate the ones row into h1

    w2a = jnp.zeros((nb, Hb + A, Hb + A), f32)
    w2a = w2a.at[:, :Hb, :Hb].set(w2bd)
    w2a = w2a.at[:, :Hb, Hb].set(b2s)
    w2a = w2a.at[:, Hb, Hb].set(1.0)        # keep propagating the ones row

    w3a = jnp.zeros((nb, Doutb, Hb + A), f32)
    w3a = w3a.at[:, :, :Hb].set(w3bd)
    w3a = w3a.at[:, :, Hb].set(b3s)

    return {"w1_aug": w1a, "w2_aug": w2a, "w3_aug": w3a}


# --------------------------------------------------------------------------- #
# Forward wrapper
# --------------------------------------------------------------------------- #
def multi_network_forward(x, prepared, *, transpose_output=True):
    """result[i] = MLP_i(x[i]).  x: (num_networks, N, d_in) f32.

    `prepared` comes from prepare_params() (done once, outside the forward path).
    Returns (num_networks, N, d_out) if transpose_output else the kernel-native
    lane-dense (num_networks, d_out, N) layout (prefer the latter if the consumer
    can accept it — saves one XLA transpose per call).
    """
    num_networks, N, d_in = x.shape
    w1a, w2a, w3a = prepared["w1_aug"], prepared["w2_aug"], prepared["w3_aug"]
    nb = w1a.shape[0]
    if num_networks % nb != 0:
        raise ValueError("prepared params do not match num_networks")
    G = num_networks // nb
    if w1a.shape[2] != G * d_in + _AUG:
        raise ValueError("prepared params do not match x's input channel count")
    doutb = w3a.shape[1]
    d_out = doutb // G

    x = x.astype(jnp.float32)

    out_flat = pl.pallas_call(
        _multi_mlp_kernel,
        out_shape=jax.ShapeDtypeStruct((num_networks * d_out, N), jnp.float32),
        grid_spec=pltpu.PrefetchScalarGridSpec(
            num_scalar_prefetch=0,
            grid=(nb,),
            in_specs=[
                pl.BlockSpec((G, N, d_in), lambda i: (i, 0, 0)),
                pl.BlockSpec((1,) + w1a.shape[1:], lambda i: (i, 0, 0)),
                pl.BlockSpec((1,) + w2a.shape[1:], lambda i: (i, 0, 0)),
                pl.BlockSpec((1,) + w3a.shape[1:], lambda i: (i, 0, 0)),
            ],
            out_specs=pl.BlockSpec((doutb, N), lambda i: (i, 0)),
        ),
        compiler_params=pltpu.CompilerParams(
            # Blocks are independent; "parallel" vs "arbitrary" has ~zero codegen
            # impact.  Use core_parallel / pl.core_map if sharding the block axis
            # across v7x's two TensorCores is desired.
            dimension_semantics=("arbitrary",),
        ),
    )(x, w1a, w2a, w3a)

    out = out_flat.reshape(num_networks, d_out, N)
    if transpose_output:
        out = jnp.swapaxes(out, 1, 2)   # module layout (num_networks, N, d_out)
    return out


# --------------------------------------------------------------------------- #
# Parameter init + pure-JAX reference
# --------------------------------------------------------------------------- #
def init_params(key, num_networks, d_in, hidden, d_out):
    """Deterministic per-network weight init (each network has its own weights)."""
    ks = jax.random.split(key, 6)

    def glorot(k, shape, fan_in):
        return jax.random.normal(k, shape, jnp.float32) / jnp.sqrt(fan_in)

    return {
        "w1": glorot(ks[0], (num_networks, d_in, hidden), d_in),
        "b1": 0.01 * jax.random.normal(ks[1], (num_networks, 1, hidden), jnp.float32),
        "w2": glorot(ks[2], (num_networks, hidden, hidden), hidden),
        "b2": 0.01 * jax.random.normal(ks[3], (num_networks, 1, hidden), jnp.float32),
        "w3": glorot(ks[4], (num_networks, hidden, d_out), hidden),
        "b3": 0.01 * jax.random.normal(ks[5], (num_networks, 1, d_out), jnp.float32),
    }


def reference_forward(x, params):
    """Per-network f32 loop mirroring MultiNetwork.forward (highest precision)."""
    hp = jax.lax.Precision.HIGHEST
    outs = []
    for i in range(x.shape[0]):
        h = jnp.maximum(jnp.dot(x[i], params["w1"][i], precision=hp) + params["b1"][i], 0.0)
        h = jnp.maximum(jnp.dot(h, params["w2"][i], precision=hp) + params["b2"][i], 0.0)
        o = jnp.dot(h, params["w3"][i], precision=hp) + params["b3"][i]
        outs.append(o)
    return jnp.stack(outs, axis=0)


if __name__ == "__main__":
    num_networks = 8      # number of per-block MLPs
    N = 128               # points per network block
    d_in = 8              # input_ch
    hidden = 32           # netwidth  (G*hidden = 256 -> fills the v6e/v7x MXU)
    d_out = 4             # args.output_ch

    key = jax.random.PRNGKey(0)
    kx, kp = jax.random.split(key)
    x = jax.random.normal(kx, (num_networks, N, d_in), jnp.float32)
    params = init_params(kp, num_networks, d_in, hidden, d_out)

    # One-time preprocessing (hoisted out of the per-call forward path).
    prepared = prepare_params(params)

    fwd = jax.jit(multi_network_forward)
    out = jax.block_until_ready(fwd(x, prepared))

    ref = reference_forward(x, params)
    assert out.shape == (num_networks, N, d_out)
    assert out.dtype == jnp.float32
    assert jnp.allclose(out, ref, atol=2e-2, rtol=2e-2), (
        f"max abs err {float(jnp.max(jnp.abs(out - ref)))}")

    # TODO(synk): optimizer_step / optimizer_zero_grad / initialize_multi_mlp /
    # decay_lrate / checkpoint I/O are host-side training utilities with no kernel
    # equivalent; only forward() is implemented.
    print("KERNEL_OK")
</pallas_src>

<mosaic_0001>
module attributes {stable_mosaic.version = 11 : i64} {
  func.func @_multi_mlp_kernel(%arg0: i32, %arg1: memref<8x128x8xf32, #tpu.memory_space<vmem>>, %arg2: memref<1x264x72xf32, #tpu.memory_space<vmem>>, %arg3: memref<1x264x264xf32, #tpu.memory_space<vmem>>, %arg4: memref<1x32x264xf32, #tpu.memory_space<vmem>>, %arg5: memref<32x128xf32, #tpu.memory_space<vmem>>) attributes {dimension_semantics = [#tpu.dimension_semantics<arbitrary>], iteration_bounds = array<i64: 1>, scalar_prefetch = 0 : i64, scratch_operands = 0 : i64, tpu.core_type = #tpu.core_type<tc>, window_params = [{transform_indices = @transform_0, window_bounds = array<i64: 8, 128, 8>}, {transform_indices = @transform_1, window_bounds = array<i64: 1, 264, 72>}, {transform_indices = @transform_2, window_bounds = array<i64: 1, 264, 264>}, {transform_indices = @transform_3, window_bounds = array<i64: 1, 32, 264>}, {transform_indices = @transform_4, window_bounds = array<i64: 32, 128>}]} {
    %0 = tpu.iota {dimensions = array<i32: 0>} : vector<8x128xi32>
    %c0_i32 = arith.constant 0 : i32
    %1 = vector.broadcast %c0_i32 : i32 to vector<8x128xi32>
    %2 = arith.cmpi eq, %0, %1 : vector<8x128xi32>
    %3 = arith.extui %2 : vector<8x128xi1> to vector<8x128xi32>
    %4 = arith.sitofp %3 : vector<8x128xi32> to vector<8x128xf32>
    %c0 = arith.constant 0 : index
    %c0_0 = arith.constant 0 : index
    %c0_1 = arith.constant 0 : index
    %5 = vector.load %arg1[%c0, %c0_0, %c0_1] : memref<8x128x8xf32, #tpu.memory_space<vmem>>, vector<1x128x8xf32>
    %6 = vector.shape_cast %5 : vector<1x128x8xf32> to vector<128x8xf32>
    %7 = tpu.transpose %6, [1, 0] : vector<128x8xf32> -> vector<8x128xf32>
    %c1 = arith.constant 1 : index
    %c0_2 = arith.constant 0 : index
    %c0_3 = arith.constant 0 : index
    %8 = vector.load %arg1[%c1, %c0_2, %c0_3] : memref<8x128x8xf32, #tpu.memory_space<vmem>>, vector<1x128x8xf32>
    %9 = vector.shape_cast %8 : vector<1x128x8xf32> to vector<128x8xf32>
    %10 = tpu.transpose %9, [1, 0] : vector<128x8xf32> -> vector<8x128xf32>
    %c2 = arith.constant 2 : index
    %c0_4 = arith.constant 0 : index
    %c0_5 = arith.constant 0 : index
    %11 = vector.load %arg1[%c2, %c0_4, %c0_5] : memref<8x128x8xf32, #tpu.memory_space<vmem>>, vector<1x128x8xf32>
    %12 = vector.shape_cast %11 : vector<1x128x8xf32> to vector<128x8xf32>
    %13 = tpu.transpose %12, [1, 0] : vector<128x8xf32> -> vector<8x128xf32>
    %c3 = arith.constant 3 : index
    %c0_6 = arith.constant 0 : index
    %c0_7 = arith.constant 0 : index
    %14 = vector.load %arg1[%c3, %c0_6, %c0_7] : memref<8x128x8xf32, #tpu.memory_space<vmem>>, vector<1x128x8xf32>
    %15 = vector.shape_cast %14 : vector<1x128x8xf32> to vector<128x8xf32>
    %16 = tpu.transpose %15, [1, 0] : vector<128x8xf32> -> vector<8x128xf32>
    %c4 = arith.constant 4 : index
    %c0_8 = arith.constant 0 : index
    %c0_9 = arith.constant 0 : index
    %17 = vector.load %arg1[%c4, %c0_8, %c0_9] : memref<8x128x8xf32, #tpu.memory_space<vmem>>, vector<1x128x8xf32>
    %18 = vector.shape_cast %17 : vector<1x128x8xf32> to vector<128x8xf32>
    %19 = tpu.transpose %18, [1, 0] : vector<128x8xf32> -> vector<8x128xf32>
    %c5 = arith.constant 5 : index
    %c0_10 = arith.constant 0 : index
    %c0_11 = arith.constant 0 : index
    %20 = vector.load %arg1[%c5, %c0_10, %c0_11] : memref<8x128x8xf32, #tpu.memory_space<vmem>>, vector<1x128x8xf32>
    %21 = vector.shape_cast %20 : vector<1x128x8xf32> to vector<128x8xf32>
    %22 = tpu.transpose %21, [1, 0] : vector<128x8xf32> -> vector<8x128xf32>
    %c6 = arith.constant 6 : index
    %c0_12 = arith.constant 0 : index
    %c0_13 = arith.constant 0 : index
    %23 = vector.load %arg1[%c6, %c0_12, %c0_13] : memref<8x128x8xf32, #tpu.memory_space<vmem>>, vector<1x128x8xf32>
    %24 = vector.shape_cast %23 : vector<1x128x8xf32> to vector<128x8xf32>
    %25 = tpu.transpose %24, [1, 0] : vector<128x8xf32> -> vector<8x128xf32>
    %c7 = arith.constant 7 : index
    %c0_14 = arith.constant 0 : index
    %c0_15 = arith.constant 0 : index
    %26 = vector.load %arg1[%c7, %c0_14, %c0_15] : memref<8x128x8xf32, #tpu.memory_space<vmem>>, vector<1x128x8xf32>
    %27 = vector.shape_cast %26 : vector<1x128x8xf32> to vector<128x8xf32>
    %28 = tpu.transpose %27, [1, 0] : vector<128x8xf32> -> vector<8x128xf32>
    %29 = tpu.concatenate %7, %10, %13, %16, %19, %22, %25, %28, %4 in 0 : vector<8x128xf32>, vector<8x128xf32>, vector<8x128xf32>, vector<8x128xf32>, vector<8x128xf32>, vector<8x128xf32>, vector<8x128xf32>, vector<8x128xf32>, vector<8x128xf32> -> vector<72x128xf32>
    %c0_16 = arith.constant 0 : index
    %c0_17 = arith.constant 0 : index
    %c0_18 = arith.constant 0 : index
    %30 = vector.load %arg2[%c0_16, %c0_17, %c0_18] : memref<1x264x72xf32, #tpu.memory_space<vmem>>, vector<1x264x72xf32>
    %31 = vector.shape_cast %30 : vector<1x264x72xf32> to vector<264x72xf32>
    %c0_19 = arith.constant 0 : index
    %c0_20 = arith.constant 0 : index
    %c0_21 = arith.constant 0 : index
    %32 = vector.load %arg3[%c0_19, %c0_20, %c0_21] : memref<1x264x264xf32, #tpu.memory_space<vmem>>, vector<1x264x264xf32>
    %33 = vector.shape_cast %32 : vector<1x264x264xf32> to vector<264x264xf32>
    %c0_22 = arith.constant 0 : index
    %c0_23 = arith.constant 0 : index
    %c0_24 = arith.constant 0 : index
    %34 = vector.load %arg4[%c0_22, %c0_23, %c0_24] : memref<1x32x264xf32, #tpu.memory_space<vmem>>, vector<1x32x264xf32>
    %35 = vector.shape_cast %34 : vector<1x32x264xf32> to vector<32x264xf32>
    %cst = arith.constant dense<0.000000e+00> : vector<264x128xf32>
    %36 = tpu.matmul %31, %29, %cst {dimension_numbers = #tpu.dot_dimension_numbers<[1], [0], [0], [1], [0, 0, 1, 1], [], []>} : vector<264x72xf32>, vector<72x128xf32>, vector<264x128xf32> -> vector<264x128xf32>
    %cst_25 = arith.constant 0.000000e+00 : f32
    %37 = vector.broadcast %cst_25 : f32 to vector<264x128xf32>
    %38 = arith.maximumf %36, %37 : vector<264x128xf32>
    %cst_26 = arith.constant dense<0.000000e+00> : vector<264x128xf32>
    %39 = tpu.matmul %33, %38, %cst_26 {dimension_numbers = #tpu.dot_dimension_numbers<[1], [0], [0], [1], [0, 0, 1, 1], [], []>} : vector<264x264xf32>, vector<264x128xf32>, vector<264x128xf32> -> vector<264x128xf32>
    %cst_27 = arith.constant 0.000000e+00 : f32
    %40 = vector.broadcast %cst_27 : f32 to vector<264x128xf32>
    %41 = arith.maximumf %39, %40 : vector<264x128xf32>
    %cst_28 = arith.constant dense<0.000000e+00> : vector<32x128xf32>
    %42 = tpu.matmul %35, %41, %cst_28 {dimension_numbers = #tpu.dot_dimension_numbers<[1], [0], [0], [1], [0, 0, 1, 1], [], []>} : vector<32x264xf32>, vector<264x128xf32>, vector<32x128xf32> -> vector<32x128xf32>
    %c0_29 = arith.constant 0 : index
    %c0_30 = arith.constant 0 : index
    %43 = vector.load %arg5[%c0_29, %c0_30] : memref<32x128xf32, #tpu.memory_space<vmem>>, vector<32x128xf32>
    tpu.vector_store %arg5[%c0_29, %c0_30], %42 {strides = array<i32>} : memref<32x128xf32, #tpu.memory_space<vmem>>, vector<32x128xf32>,
    return
  }
  func.func @transform_0(%arg0: i32) -> (i32, i32, i32) {
    %c0_i32 = arith.constant 0 : i32
    %c0_i32_0 = arith.constant 0 : i32
    %c0_i32_1 = arith.constant 0 : i32
    return %arg0, %c0_i32, %c0_i32_0 : i32, i32, i32
  }
  func.func @transform_1(%arg0: i32) -> (i32, i32, i32) {
    %c0_i32 = arith.constant 0 : i32
    %c0_i32_0 = arith.constant 0 : i32
    %c0_i32_1 = arith.constant 0 : i32
    return %arg0, %c0_i32, %c0_i32_0 : i32, i32, i32
  }
  func.func @transform_2(%arg0: i32) -> (i32, i32, i32) {
    %c0_i32 = arith.constant 0 : i32
    %c0_i32_0 = arith.constant 0 : i32
    %c0_i32_1 = arith.constant 0 : i32
    return %arg0, %c0_i32, %c0_i32_0 : i32, i32, i32
  }
  func.func @transform_3(%arg0: i32) -> (i32, i32, i32) {
    %c0_i32 = arith.constant 0 : i32
    %c0_i32_0 = arith.constant 0 : i32
    %c0_i32_1 = arith.constant 0 : i32
    return %arg0, %c0_i32, %c0_i32_0 : i32, i32, i32
  }
  func.func @transform_4(%arg0: i32) -> (i32, i32) {
    %c0_i32 = arith.constant 0 : i32
    %c0_i32_0 = arith.constant 0 : i32
    return %arg0, %c0_i32 : i32, i32
  }
}

</mosaic_0001>

<llo_original>
// kernel: multi_network_forward.1
$region0: #{multi_network_forward.1}
  #allocation0 [shape = 'u32[]', space=smem, size = 0x4, offset = 0x4, fixed_abs, tag = 'smem constant byte address 0x4 - core index']
  #allocation1 [shape = 'u32[144,128]{1,0:T(1,128)}', space=vmem, size = 0x12000, scoped, tag = 'internal scratch']
  %s0 = inlined_call_operand.vmem [shape: f32[8,128,8], index: 0, kind: input, shape index: {}]
  %s1 = inlined_call_operand.vmem [shape: f32[1,264,72], index: 1, kind: input, shape index: {}]
  %s2 = inlined_call_operand.vmem [shape: f32[1,264,264], index: 2, kind: input, shape index: {}]
  %s3 = inlined_call_operand.vmem [shape: f32[1,32,264], index: 3, kind: input, shape index: {}]
  %s4 = inlined_call_operand.hbm [shape: f32[32,128], index: 4, kind: output, shape index: {}]
  %s5 = sld [smem:[#allocation0]]
  $region26: #{multi_network_forward.1} parent=0
    _
  %s7 = ssub.s32 1, %s5
  %s8 = scalar_select 0, %s7, %s5
  $region1: #{multi_network_forward.1} parent=0
    #allocation2 [shape = 'u8[16384]{0}', space=vmem, size = 0x4000, scoped, tag = 'output window, operand 0, single buffered']
    #allocation3 [shape = 's32[1]{0}', space=sflag, size = 0x4, scoped, tag = 'scoped memory for multi_network_forward.1']
    %9 = vsyncpa [#allocation3], 0
    // Predicated region
    $region2: #{multi_network_forward.1} parent=1 // pred_check
      _
    $region3: #{multi_network_forward.1} parent=1 // pred_check_branch
      %11 = sbr.rel (0) target = $region5
    $region4: #{multi_network_forward.1} parent=1 // pred_region
      _
    $region5: #{multi_network_forward.1} parent=1 // pred_fallthru
      _
    // Predicated region
    $region6: #{multi_network_forward.1} parent=1 // pred_check
      _
    $region7: #{multi_network_forward.1} parent=1 // pred_check_branch
      %13 = sbr.rel (0) target = $region9
    $region8: #{multi_network_forward.1} parent=1 // pred_region
      _
    $region9: #{multi_network_forward.1} parent=1 // pred_fallthru
      _
    // Predicated region
    $region10: #{multi_network_forward.1} parent=1 // pred_check
      _
    $region11: #{multi_network_forward.1} parent=1 // pred_check_branch
      %15 = sbr.rel (0) target = $region13
    $region12: #{multi_network_forward.1} parent=1 // pred_region
      _
    $region13: #{multi_network_forward.1} parent=1 // pred_fallthru
      _
    // Predicated region
    $region14: #{multi_network_forward.1} parent=1 // pred_check
      _
    $region15: #{multi_network_forward.1} parent=1 // pred_check_branch
      %17 = sbr.rel (0) target = $region17
    $region16: #{multi_network_forward.1} parent=1 // pred_region
      _
    $region17: #{multi_network_forward.1} parent=1 // pred_fallthru
      _
    %v18 = vlaneseq
    %v19 = vshrl.u32 %v18, 7
    %vm20 = vcmp.eq.s32.totalorder %v19, 0
    %v21 = vsel %vm20, 1, 0
    %v22 = vcvt.s32.f32 %v21
    %v23 = vld [vmem:[%s0] sm:$0xff]
    %v24 = vld [vmem:[%s0 + $0x8] sm:$0xff]
    %v25 = vld [vmem:[%s0 + $0x10] sm:$0xff]
    %v26 = vld [vmem:[%s0 + $0x18] sm:$0xff]
    %v27 = vld [vmem:[%s0 + $0x20] sm:$0xff]
    %v28 = vld [vmem:[%s0 + $0x28] sm:$0xff]
    %v29 = vld [vmem:[%s0 + $0x30] sm:$0xff]
    %v30 = vld [vmem:[%s0 + $0x38] sm:$0xff]
    %v31 = vld [vmem:[%s0 + $0x40] sm:$0xff]
    %v32 = vld [vmem:[%s0 + $0x48] sm:$0xff]
    %v33 = vld [vmem:[%s0 + $0x50] sm:$0xff]
    %v34 = vld [vmem:[%s0 + $0x58] sm:$0xff]
    %v35 = vld [vmem:[%s0 + $0x60] sm:$0xff]
    %v36 = vld [vmem:[%s0 + $0x68] sm:$0xff]
    %v37 = vld [vmem:[%s0 + $0x70] sm:$0xff]
    %v38 = vld [vmem:[%s0 + $0x78] sm:$0xff]
    %39 = vxpose.xlu0.b32.start [1/16] %v23, 128
    %40 = vxpose.xlu0.b32.cont [2/16] %v24, 128
    %41 = vxpose.xlu0.b32.cont [3/16] %v25, 128
    %42 = vxpose.xlu0.b32.cont [4/16] %v26, 128
    %43 = vxpose.xlu0.b32.cont [5/16] %v27, 128
    %44 = vxpose.xlu0.b32.cont [6/16] %v28, 128
    %45 = vxpose.xlu0.b32.cont [7/16] %v29, 128
    %46 = vxpose.xlu0.b32.cont [8/16] %v30, 128
    %47 = vxpose.xlu0.b32.cont [9/16] %v31, 128
    %48 = vxpose.xlu0.b32.cont [10/16] %v32, 128
    %49 = vxpose.xlu0.b32.cont [11/16] %v33, 128
    %50 = vxpose.xlu0.b32.cont [12/16] %v34, 128
    %51 = vxpose.xlu0.b32.cont [13/16] %v35, 128
    %52 = vxpose.xlu0.b32.cont [14/16] %v36, 128
    %53 = vxpose.xlu0.b32.cont [15/16] %v37, 128
    %54 = vxpose.xlu0.b32.end [16/16] %v38, 128
    %v55 = vpop.trf.xlu0
    %v56 = vpop.trf.xlu0
    %v57 = vpop.trf.xlu0
    %v58 = vpop.trf.xlu0
    %v59 = vpop.trf.xlu0
    %v60 = vpop.trf.xlu0
    %v61 = vpop.trf.xlu0
    %v62 = vpop.trf.xlu0
    %v63 = vpop.trf.xlu0
    %v64 = vpop.trf.xlu0
    %v65 = vpop.trf.xlu0
    %v66 = vpop.trf.xlu0
    %v67 = vpop.trf.xlu0
    %v68 = vpop.trf.xlu0
    %v69 = vpop.trf.xlu0
    %v70 = vpop.trf.xlu0
    %s71 = scalar_lea.vmem %s0, 128
    %v72 = vld [vmem:[%s71] sm:$0xff]
    %v73 = vld [vmem:[%s71 + $0x8] sm:$0xff]
    %v74 = vld [vmem:[%s71 + $0x10] sm:$0xff]
    %v75 = vld [vmem:[%s71 + $0x18] sm:$0xff]
    %v76 = vld [vmem:[%s71 + $0x20] sm:$0xff]
    %v77 = vld [vmem:[%s71 + $0x28] sm:$0xff]
    %v78 = vld [vmem:[%s71 + $0x30] sm:$0xff]
    %v79 = vld [vmem:[%s71 + $0x38] sm:$0xff]
    %v80 = vld [vmem:[%s71 + $0x40] sm:$0xff]
    %v81 = vld [vmem:[%s71 + $0x48] sm:$0xff]
    %v82 = vld [vmem:[%s71 + $0x50] sm:$0xff]
    %v83 = vld [vmem:[%s71 + $0x58] sm:$0xff]
    %v84 = vld [vmem:[%s71 + $0x60] sm:$0xff]
    %v85 = vld [vmem:[%s71 + $0x68] sm:$0xff]
    %v86 = vld [vmem:[%s71 + $0x70] sm:$0xff]
    %v87 = vld [vmem:[%s71 + $0x78] sm:$0xff]
    %88 = vxpose.xlu0.b32.start [1/16] %v72, 128
    %89 = vxpose.xlu0.b32.cont [2/16] %v73, 128
    %90 = vxpose.xlu0.b32.cont [3/16] %v74, 128
    %91 = vxpose.xlu0.b32.cont [4/16] %v75, 128
    %92 = vxpose.xlu0.b32.cont [5/16] %v76, 128
    %93 = vxpose.xlu0.b32.cont [6/16] %v77, 128
    %94 = vxpose.xlu0.b32.cont [7/16] %v78, 128
    %95 = vxpose.xlu0.b32.cont [8/16] %v79, 128
    %96 = vxpose.xlu0.b32.cont [9/16] %v80, 128
    %97 = vxpose.xlu0.b32.cont [10/16] %v81, 128
    %98 = vxpose.xlu0.b32.cont [11/16] %v82, 128
    %99 = vxpose.xlu0.b32.cont [12/16] %v83, 128
    %100 = vxpose.xlu0.b32.cont [13/16] %v84, 128
    %101 = vxpose.xlu0.b32.cont [14/16] %v85, 128
    %102 = vxpose.xlu0.b32.cont [15/16] %v86, 128
    %103 = vxpose.xlu0.b32.end [16/16] %v87, 128
    %v104 = vpop.trf.xlu0
    %v105 = vpop.trf.xlu0
    %v106 = vpop.trf.xlu0
    %v107 = vpop.trf.xlu0
    %v108 = vpop.trf.xlu0
    %v109 = vpop.trf.xlu0
    %v110 = vpop.trf.xlu0
    %v111 = vpop.trf.xlu0
    %v112 = vpop.trf.xlu0
    %v113 = vpop.trf.xlu0
    %v114 = vpop.trf.xlu0
    %v115 = vpop.trf.xlu0
    %v116 = vpop.trf.xlu0
    %v117 = vpop.trf.xlu0
    %v118 = vpop.trf.xlu0
    %v119 = vpop.trf.xlu0
    %s120 = scalar_lea.vmem %s0, 256
    %v121 = vld [vmem:[%s120] sm:$0xff]
    %v122 = vld [vmem:[%s120 + $0x8] sm:$0xff]
    %v123 = vld [vmem:[%s120 + $0x10] sm:$0xff]
    %v124 = vld [vmem:[%s120 + $0x18] sm:$0xff]
    %v125 = vld [vmem:[%s120 + $0x20] sm:$0xff]
    %v126 = vld [vmem:[%s120 + $0x28] sm:$0xff]
    %v127 = vld [vmem:[%s120 + $0x30] sm:$0xff]
    %v128 = vld [vmem:[%s120 + $0x38] sm:$0xff]
    %v129 = vld [vmem:[%s120 + $0x40] sm:$0xff]
    %v130 = vld [vmem:[%s120 + $0x48] sm:$0xff]
    %v131 = vld [vmem:[%s120 + $0x50] sm:$0xff]
    %v132 = vld [vmem:[%s120 + $0x58] sm:$0xff]
    %v133 = vld [vmem:[%s120 + $0x60] sm:$0xff]
    %v134 = vld [vmem:[%s120 + $0x68] sm:$0xff]
    %v135 = vld [vmem:[%s120 + $0x70] sm:$0xff]
    %v136 = vld [vmem:[%s120 + $0x78] sm:$0xff]
    %137 = vxpose.xlu0.b32.start [1/16] %v121, 128
    %138 = vxpose.xlu0.b32.cont [2/16] %v122, 128
    %139 = vxpose.xlu0.b32.cont [3/16] %v123, 128
    %140 = vxpose.xlu0.b32.cont [4/16] %v124, 128
    %141 = vxpose.xlu0.b32.cont [5/16] %v125, 128
    %142 = vxpose.xlu0.b32.cont [6/16] %v126, 128
    %143 = vxpose.xlu0.b32.cont [7/16] %v127, 128
    %144 = vxpose.xlu0.b32.cont [8/16] %v128, 128
    %145 = vxpose.xlu0.b32.cont [9/16] %v129, 128
    %146 = vxpose.xlu0.b32.cont [10/16] %v130, 128
    %147 = vxpose.xlu0.b32.cont [11/16] %v131, 128
    %148 = vxpose.xlu0.b32.cont [12/16] %v132, 128
    %149 = vxpose.xlu0.b32.cont [13/16] %v133, 128
    %150 = vxpose.xlu0.b32.cont [14/16] %v134, 128
    %151 = vxpose.xlu0.b32.cont [15/16] %v135, 128
    %152 = vxpose.xlu0.b32.end [16/16] %v136, 128
    %v153 = vpop.trf.xlu0
    %v154 = vpop.trf.xlu0
    %v155 = vpop.trf.xlu0
    %v156 = vpop.trf.xlu0
    %v157 = vpop.trf.xlu0
    %v158 = vpop.trf.xlu0
    %v159 = vpop.trf.xlu0
    %v160 = vpop.trf.xlu0
    %v161 = vpop.trf.xlu0
    %v162 = vpop.trf.xlu0
    %v163 = vpop.trf.xlu0
    %v164 = vpop.trf.xlu0
    %v165 = vpop.trf.xlu0
    %v166 = vpop.trf.xlu0
    %v167 = vpop.trf.xlu0
    %v168 = vpop.trf.xlu0
    %s169 = scalar_lea.vmem %s0, 384
    %v170 = vld [vmem:[%s169] sm:$0xff]
    %v171 = vld [vmem:[%s169 + $0x8] sm:$0xff]
    %v172 = vld [vmem:[%s169 + $0x10] sm:$0xff]
    %v173 = vld [vmem:[%s169 + $0x18] sm:$0xff]
    %v174 = vld [vmem:[%s169 + $0x20] sm:$0xff]
    %v175 = vld [vmem:[%s169 + $0x28] sm:$0xff]
    %v176 = vld [vmem:[%s169 + $0x30] sm:$0xff]
    %v177 = vld [vmem:[%s169 + $0x38] sm:$0xff]
    %v178 = vld [vmem:[%s169 + $0x40] sm:$0xff]
    %v179 = vld [vmem:[%s169 + $0x48] sm:$0xff]
    %v180 = vld [vmem:[%s169 + $0x50] sm:$0xff]
    %v181 = vld [vmem:[%s169 + $0x58] sm:$0xff]
    %v182 = vld [vmem:[%s169 + $0x60] sm:$0xff]
    %v183 = vld [vmem:[%s169 + $0x68] sm:$0xff]
    %v184 = vld [vmem:[%s169 + $0x70] sm:$0xff]
    %v185 = vld [vmem:[%s169 + $0x78] sm:$0xff]
    %186 = vxpose.xlu0.b32.start [1/16] %v170, 128
    %187 = vxpose.xlu0.b32.cont [2/16] %v171, 128
    %188 = vxpose.xlu0.b32.cont [3/16] %v172, 128
    %189 = vxpose.xlu0.b32.cont [4/16] %v173, 128
    %190 = vxpose.xlu0.b32.cont [5/16] %v174, 128
    %191 = vxpose.xlu0.b32.cont [6/16] %v175, 128
    %192 = vxpose.xlu0.b32.cont [7/16] %v176, 128
    %193 = vxpose.xlu0.b32.cont [8/16] %v177, 128
    %194 = vxpose.xlu0.b32.cont [9/16] %v178, 128
    %195 = vxpose.xlu0.b32.cont [10/16] %v179, 128
    %196 = vxpose.xlu0.b32.cont [11/16] %v180, 128
    %197 = vxpose.xlu0.b32.cont [12/16] %v181, 128
    %198 = vxpose.xlu0.b32.cont [13/16] %v182, 128
    %199 = vxpose.xlu0.b32.cont [14/16] %v183, 128
    %200 = vxpose.xlu0.b32.cont [15/16] %v184, 128
    %201 = vxpose.xlu0.b32.end [16/16] %v185, 128
    %v202 = vpop.trf.xlu0
    %v203 = vpop.trf.xlu0
    %v204 = vpop.trf.xlu0
    %v205 = vpop.trf.xlu0
    %v206 = vpop.trf.xlu0
    %v207 = vpop.trf.xlu0
    %v208 = vpop.trf.xlu0
    %v209 = vpop.trf.xlu0
    %v210 = vpop.trf.xlu0
    %v211 = vpop.trf.xlu0
    %v212 = vpop.trf.xlu0
    %v213 = vpop.trf.xlu0
    %v214 = vpop.trf.xlu0
    %v215 = vpop.trf.xlu0
    %v216 = vpop.trf.xlu0
    %v217 = vpop.trf.xlu0
    %s218 = scalar_lea.vmem %s0, 512
    %v219 = vld [vmem:[%s218] sm:$0xff]
    %v220 = vld [vmem:[%s218 + $0x8] sm:$0xff]
    %v221 = vld [vmem:[%s218 + $0x10] sm:$0xff]
    %v222 = vld [vmem:[%s218 + $0x18] sm:$0xff]
    %v223 = vld [vmem:[%s218 + $0x20] sm:$0xff]
    %v224 = vld [vmem:[%s218 + $0x28] sm:$0xff]
    %v225 = vld [vmem:[%s218 + $0x30] sm:$0xff]
    %v226 = vld [vmem:[%s218 + $0x38] sm:$0xff]
    %v227 = vld [vmem:[%s218 + $0x40] sm:$0xff]
    %v228 = vld [vmem:[%s218 + $0x48] sm:$0xff]
    %v229 = vld [vmem:[%s218 + $0x50] sm:$0xff]
    %v230 = vld [vmem:[%s218 + $0x58] sm:$0xff]
    %v231 = vld [vmem:[%s218 + $0x60] sm:$0xff]
    %v232 = vld [vmem:[%s218 + $0x68] sm:$0xff]
    %v233 = vld [vmem:[%s218 + $0x70] sm:$0xff]
    %v234 = vld [vmem:[%s218 + $0x78] sm:$0xff]
    %235 = vxpose.xlu0.b32.start [1/16] %v219, 128
    %236 = vxpose.xlu0.b32.cont [2/16] %v220, 128
    %237 = vxpose.xlu0.b32.cont [3/16] %v221, 128
    %238 = vxpose.xlu0.b32.cont [4/16] %v222, 128
    %239 = vxpose.xlu0.b32.cont [5/16] %v223, 128
    %240 = vxpose.xlu0.b32.cont [6/16] %v224, 128
    %241 = vxpose.xlu0.b32.cont [7/16] %v225, 128
    %242 = vxpose.xlu0.b32.cont [8/16] %v226, 128
    %243 = vxpose.xlu0.b32.cont [9/16] %v227, 128
    %244 = vxpose.xlu0.b32.cont [10/16] %v228, 128
    %245 = vxpose.xlu0.b32.cont [11/16] %v229, 128
    %246 = vxpose.xlu0.b32.cont [12/16] %v230, 128
    %247 = vxpose.xlu0.b32.cont [13/16] %v231, 128
    %248 = vxpose.xlu0.b32.cont [14/16] %v232, 128
    %249 = vxpose.xlu0.b32.cont [15/16] %v233, 128
    %250 = vxpose.xlu0.b32.end [16/16] %v234, 128
    %v251 = vpop.trf.xlu0
    %v252 = vpop.trf.xlu0
    %v253 = vpop.trf.xlu0
    %v254 = vpop.trf.xlu0
    %v255 = vpop.trf.xlu0
    %v256 = vpop.trf.xlu0
    %v257 = vpop.trf.xlu0
    %v258 = vpop.trf.xlu0
    %v259 = vpop.trf.xlu0
    %v260 = vpop.trf.xlu0
    %v261 = vpop.trf.xlu0
    %v262 = vpop.trf.xlu0
    %v263 = vpop.trf.xlu0
    %v264 = vpop.trf.xlu0
    %v265 = vpop.trf.xlu0
    %v266 = vpop.trf.xlu0
    %s267 = scalar_lea.vmem %s0, 640
    %v268 = vld [vmem:[%s267] sm:$0xff]
    %v269 = vld [vmem:[%s267 + $0x8] sm:$0xff]
    %v270 = vld [vmem:[%s267 + $0x10] sm:$0xff]
    %v271 = vld [vmem:[%s267 + $0x18] sm:$0xff]
    %v272 = vld [vmem:[%s267 + $0x20] sm:$0xff]
    %v273 = vld [vmem:[%s267 + $0x28] sm:$0xff]
    %v274 = vld [vmem:[%s267 + $0x30] sm:$0xff]
    %v275 = vld [vmem:[%s267 + $0x38] sm:$0xff]
    %v276 = vld [vmem:[%s267 + $0x40] sm:$0xff]
    %v277 = vld [vmem:[%s267 + $0x48] sm:$0xff]
    %v278 = vld [vmem:[%s267 + $0x50] sm:$0xff]
    %v279 = vld [vmem:[%s267 + $0x58] sm:$0xff]
    %v280 = vld [vmem:[%s267 + $0x60] sm:$0xff]
    %v281 = vld [vmem:[%s267 + $0x68] sm:$0xff]
    %v282 = vld [vmem:[%s267 + $0x70] sm:$0xff]
    %v283 = vld [vmem:[%s267 + $0x78] sm:$0xff]
    %284 = vxpose.xlu0.b32.start [1/16] %v268, 128
    %285 = vxpose.xlu0.b32.cont [2/16] %v269, 128
    %286 = vxpose.xlu0.b32.cont [3/16] %v270, 128
    %287 = vxpose.xlu0.b32.cont [4/16] %v271, 128
    %288 = vxpose.xlu0.b32.cont [5/16] %v272, 128
    %289 = vxpose.xlu0.b32.cont [6/16] %v273, 128
    %290 = vxpose.xlu0.b32.cont [7/16] %v274, 128
    %291 = vxpose.xlu0.b32.cont [8/16] %v275, 128
    %292 = vxpose.xlu0.b32.cont [9/16] %v276, 128
    %293 = vxpose.xlu0.b32.cont [10/16] %v277, 128
    %294 = vxpose.xlu0.b32.cont [11/16] %v278, 128
    %295 = vxpose.xlu0.b32.cont [12/16] %v279, 128
    %296 = vxpose.xlu0.b32.cont [13/16] %v280, 128
    %297 = vxpose.xlu0.b32.cont [14/16] %v281, 128
    %298 = vxpose.xlu0.b32.cont [15/16] %v282, 128
    %299 = vxpose.xlu0.b32.end [16/16] %v283, 128
    %v300 = vpop.trf.xlu0
    %v301 = vpop.trf.xlu0
    %v302 = vpop.trf.xlu0
    %v303 = vpop.trf.xlu0
    %v304 = vpop.trf.xlu0
    %v305 = vpop.trf.xlu0
    %v306 = vpop.trf.xlu0
    %v307 = vpop.trf.xlu0
    %v308 = vpop.trf.xlu0
    %v309 = vpop.trf.xlu0
    %v310 = vpop.trf.xlu0
    %v311 = vpop.trf.xlu0
    %v312 = vpop.trf.xlu0
    %v313 = vpop.trf.xlu0
    %v314 = vpop.trf.xlu0
    %v315 = vpop.trf.xlu0
    %s316 = scalar_lea.vmem %s0, 768
    %v317 = vld [vmem:[%s316] sm:$0xff]
    %v318 = vld [vmem:[%s316 + $0x8] sm:$0xff]
    %v319 = vld [vmem:[%s316 + $0x10] sm:$0xff]
    %v320 = vld [vmem:[%s316 + $0x18] sm:$0xff]
    %v321 = vld [vmem:[%s316 + $0x20] sm:$0xff]
    %v322 = vld [vmem:[%s316 + $0x28] sm:$0xff]
    %v323 = vld [vmem:[%s316 + $0x30] sm:$0xff]
    %v324 = vld [vmem:[%s316 + $0x38] sm:$0xff]
    %v325 = vld [vmem:[%s316 + $0x40] sm:$0xff]
    %v326 = vld [vmem:[%s316 + $0x48] sm:$0xff]
    %v327 = vld [vmem:[%s316 + $0x50] sm:$0xff]
    %v328 = vld [vmem:[%s316 + $0x58] sm:$0xff]
    %v329 = vld [vmem:[%s316 + $0x60] sm:$0xff]
    %v330 = vld [vmem:[%s316 + $0x68] sm:$0xff]
    %v331 = vld [vmem:[%s316 + $0x70] sm:$0xff]
    %v332 = vld [vmem:[%s316 + $0x78] sm:$0xff]
    %333 = vxpose.xlu0.b32.start [1/16] %v317, 128
    %334 = vxpose.xlu0.b32.cont [2/16] %v318, 128
    %335 = vxpose.xlu0.b32.cont [3/16] %v319, 128
    %336 = vxpose.xlu0.b32.cont [4/16] %v320, 128
    %337 = vxpose.xlu0.b32.cont [5/16] %v321, 128
    %338 = vxpose.xlu0.b32.cont [6/16] %v322, 128
    %339 = vxpose.xlu0.b32.cont [7/16] %v323, 128
    %340 = vxpose.xlu0.b32.cont [8/16] %v324, 128
    %341 = vxpose.xlu0.b32.cont [9/16] %v325, 128
    %342 = vxpose.xlu0.b32.cont [10/16] %v326, 128
    %343 = vxpose.xlu0.b32.cont [11/16] %v327, 128
    %344 = vxpose.xlu0.b32.cont [12/16] %v328, 128
    %345 = vxpose.xlu0.b32.cont [13/16] %v329, 128
    %346 = vxpose.xlu0.b32.cont [14/16] %v330, 128
    %347 = vxpose.xlu0.b32.cont [15/16] %v331, 128
    %348 = vxpose.xlu0.b32.end [16/16] %v332, 128
    %v349 = vpop.trf.xlu0
    %v350 = vpop.trf.xlu0
    %v351 = vpop.trf.xlu0
    %v352 = vpop.trf.xlu0
    %v353 = vpop.trf.xlu0
    %v354 = vpop.trf.xlu0
    %v355 = vpop.trf.xlu0
    %v356 = vpop.trf.xlu0
    %v357 = vpop.trf.xlu0
    %v358 = vpop.trf.xlu0
    %v359 = vpop.trf.xlu0
    %v360 = vpop.trf.xlu0
    %v361 = vpop.trf.xlu0
    %v362 = vpop.trf.xlu0
    %v363 = vpop.trf.xlu0
    %v364 = vpop.trf.xlu0
    %s365 = scalar_lea.vmem %s0, 896
    %v366 = vld [vmem:[%s365] sm:$0xff]
    %v367 = vld [vmem:[%s365 + $0x8] sm:$0xff]
    %v368 = vld [vmem:[%s365 + $0x10] sm:$0xff]
    %v369 = vld [vmem:[%s365 + $0x18] sm:$0xff]
    %v370 = vld [vmem:[%s365 + $0x20] sm:$0xff]
    %v371 = vld [vmem:[%s365 + $0x28] sm:$0xff]
    %v372 = vld [vmem:[%s365 + $0x30] sm:$0xff]
    %v373 = vld [vmem:[%s365 + $0x38] sm:$0xff]
    %v374 = vld [vmem:[%s365 + $0x40] sm:$0xff]
    %v375 = vld [vmem:[%s365 + $0x48] sm:$0xff]
    %v376 = vld [vmem:[%s365 + $0x50] sm:$0xff]
    %v377 = vld [vmem:[%s365 + $0x58] sm:$0xff]
    %v378 = vld [vmem:[%s365 + $0x60] sm:$0xff]
    %v379 = vld [vmem:[%s365 + $0x68] sm:$0xff]
    %v380 = vld [vmem:[%s365 + $0x70] sm:$0xff]
    %v381 = vld [vmem:[%s365 + $0x78] sm:$0xff]
    %382 = vxpose.xlu0.b32.start [1/16] %v366, 128
    %383 = vxpose.xlu0.b32.cont [2/16] %v367, 128
    %384 = vxpose.xlu0.b32.cont [3/16] %v368, 128
    %385 = vxpose.xlu0.b32.cont [4/16] %v369, 128
    %386 = vxpose.xlu0.b32.cont [5/16] %v370, 128
    %387 = vxpose.xlu0.b32.cont [6/16] %v371, 128
    %388 = vxpose.xlu0.b32.cont [7/16] %v372, 128
    %389 = vxpose.xlu0.b32.cont [8/16] %v373, 128
    %390 = vxpose.xlu0.b32.cont [9/16] %v374, 128
    %391 = vxpose.xlu0.b32.cont [10/16] %v375, 128
    %392 = vxpose.xlu0.b32.cont [11/16] %v376, 128
    %393 = vxpose.xlu0.b32.cont [12/16] %v377, 128
    %394 = vxpose.xlu0.b32.cont [13/16] %v378, 128
    %395 = vxpose.xlu0.b32.cont [14/16] %v379, 128
    %396 = vxpose.xlu0.b32.cont [15/16] %v380, 128
    %397 = vxpose.xlu0.b32.end [16/16] %v381, 128
    %v398 = vpop.trf.xlu0
    %v399 = vpop.trf.xlu0
    %v400 = vpop.trf.xlu0
    %v401 = vpop.trf.xlu0
    %v402 = vpop.trf.xlu0
    %v403 = vpop.trf.xlu0
    %v404 = vpop.trf.xlu0
    %v405 = vpop.trf.xlu0
    %v406 = vpop.trf.xlu0
    %v407 = vpop.trf.xlu0
    %v408 = vpop.trf.xlu0
    %v409 = vpop.trf.xlu0
    %v410 = vpop.trf.xlu0
    %v411 = vpop.trf.xlu0
    %v412 = vpop.trf.xlu0
    %v413 = vpop.trf.xlu0
    %v414 = vld [vmem:[%s1] sm:$0xff]
    %v415 = vld [vmem:[%s1 + $0x8] sm:$0xff]
    %v416 = vld [vmem:[%s1 + $0x10] sm:$0xff]
    %v417 = vld [vmem:[%s1 + $0x18] sm:$0xff]
    %v418 = vld [vmem:[%s1 + $0x20] sm:$0xff]
    %v419 = vld [vmem:[%s1 + $0x28] sm:$0xff]
    %v420 = vld [vmem:[%s1 + $0x30] sm:$0xff]
    %v421 = vld [vmem:[%s1 + $0x38] sm:$0xff]
    %v422 = vld [vmem:[%s1 + $0x40] sm:$0xff]
    %v423 = vld [vmem:[%s1 + $0x48] sm:$0xff]
    %v424 = vld [vmem:[%s1 + $0x50] sm:$0xff]
    %v425 = vld [vmem:[%s1 + $0x58] sm:$0xff]
    %v426 = vld [vmem:[%s1 + $0x60] sm:$0xff]
    %v427 = vld [vmem:[%s1 + $0x68] sm:$0xff]
    %v428 = vld [vmem:[%s1 + $0x70] sm:$0xff]
    %v429 = vld [vmem:[%s1 + $0x78] sm:$0xff]
    %v430 = vld [vmem:[%s1 + $0x80] sm:$0xff]
    %v431 = vld [vmem:[%s1 + $0x88] sm:$0xff]
    %v432 = vld [vmem:[%s1 + $0x90] sm:$0xff]
    %v433 = vld [vmem:[%s1 + $0x98] sm:$0xff]
    %v434 = vld [vmem:[%s1 + $0xa0] sm:$0xff]
    %v435 = vld [vmem:[%s1 + $0xa8] sm:$0xff]
    %v436 = vld [vmem:[%s1 + $0xb0] sm:$0xff]
    %v437 = vld [vmem:[%s1 + $0xb8] sm:$0xff]
    %v438 = vld [vmem:[%s1 + $0xc0] sm:$0xff]
    %v439 = vld [vmem:[%s1 + $0xc8] sm:$0xff]
    %v440 = vld [vmem:[%s1 + $0xd0] sm:$0xff]
    %v441 = vld [vmem:[%s1 + $0xd8] sm:$0xff]
    %v442 = vld [vmem:[%s1 + $0xe0] sm:$0xff]
    %v443 = vld [vmem:[%s1 + $0xe8] sm:$0xff]
    %v444 = vld [vmem:[%s1 + $0xf0] sm:$0xff]
    %v445 = vld [vmem:[%s1 + $0xf8] sm:$0xff]
    %v446 = vld [vmem:[%s1 + $0x100] sm:$0xff]
    %v447 = vld [vmem:[%s2] sm:$0xff]
    %v448 = vld [vmem:[%s2 + $0x8] sm:$0xff]
    %v449 = vld [vmem:[%s2 + $0x10] sm:$0xff]
    %v450 = vld [vmem:[%s2 + $0x18] sm:$0xff]
    %v451 = vld [vmem:[%s2 + $0x20] sm:$0xff]
    %v452 = vld [vmem:[%s2 + $0x28] sm:$0xff]
    %v453 = vld [vmem:[%s2 + $0x30] sm:$0xff]
    %v454 = vld [vmem:[%s2 + $0x38] sm:$0xff]
    %v455 = vld [vmem:[%s2 + $0x40] sm:$0xff]
    %v456 = vld [vmem:[%s2 + $0x48] sm:$0xff]
    %v457 = vld [vmem:[%s2 + $0x50] sm:$0xff]
    %v458 = vld [vmem:[%s2 + $0x58] sm:$0xff]
    %v459 = vld [vmem:[%s2 + $0x60] sm:$0xff]
    %v460 = vld [vmem:[%s2 + $0x68] sm:$0xff]
    %v461 = vld [vmem:[%s2 + $0x70] sm:$0xff]
    %v462 = vld [vmem:[%s2 + $0x78] sm:$0xff]
    %v463 = vld [vmem:[%s2 + $0x80] sm:$0xff]
    %v464 = vld [vmem:[%s2 + $0x88] sm:$0xff]
    %v465 = vld [vmem:[%s2 + $0x90] sm:$0xff]
    %v466 = vld [vmem:[%s2 + $0x98] sm:$0xff]
    %v467 = vld [vmem:[%s2 + $0xa0] sm:$0xff]
    %v468 = vld [vmem:[%s2 + $0xa8] sm:$0xff]
    %v469 = vld [vmem:[%s2 + $0xb0] sm:$0xff]
    %v470 = vld [vmem:[%s2 + $0xb8] sm:$0xff]
    %v471 = vld [vmem:[%s2 + $0xc0] sm:$0xff]
    %v472 = vld [vmem:[%s2 + $0xc8] sm:$0xff]
    %v473 = vld [vmem:[%s2 + $0xd0] sm:$0xff]
    %v474 = vld [vmem:[%s2 + $0xd8] sm:$0xff]
    %v475 = vld [vmem:[%s2 + $0xe0] sm:$0xff]
    %v476 = vld [vmem:[%s2 + $0xe8] sm:$0xff]
    %v477 = vld [vmem:[%s2 + $0xf0] sm:$0xff]
    %v478 = vld [vmem:[%s2 + $0xf8] sm:$0xff]
    %v479 = vld [vmem:[%s2 + $0x100] sm:$0xff]
    %v480 = vld [vmem:[%s2 + $0x108] sm:$0xff]
    %v481 = vld [vmem:[%s2 + $0x110] sm:$0xff]
    %v482 = vld [vmem:[%s2 + $0x118] sm:$0xff]
    %v483 = vld [vmem:[%s2 + $0x120] sm:$0xff]
    %v484 = vld [vmem:[%s2 + $0x128] sm:$0xff]
    %v485 = vld [vmem:[%s2 + $0x130] sm:$0xff]
    %v486 = vld [vmem:[%s2 + $0x138] sm:$0xff]
    %v487 = vld [vmem:[%s2 + $0x140] sm:$0xff]
    %v488 = vld [vmem:[%s2 + $0x148] sm:$0xff]
    %v489 = vld [vmem:[%s2 + $0x150] sm:$0xff]
    %v490 = vld [vmem:[%s2 + $0x158] sm:$0xff]
    %v491 = vld [vmem:[%s2 + $0x160] sm:$0xff]
    %v492 = vld [vmem:[%s2 + $0x168] sm:$0xff]
    %v493 = vld [vmem:[%s2 + $0x170] sm:$0xff]
    %v494 = vld [vmem:[%s2 + $0x178] sm:$0xff]
    %v495 = vld [vmem:[%s2 + $0x180] sm:$0xff]
    %v496 = vld [vmem:[%s2 + $0x188] sm:$0xff]
    %v497 = vld [vmem:[%s2 + $0x190] sm:$0xff]
    %v498 = vld [vmem:[%s2 + $0x198] sm:$0xff]
    %v499 = vld [vmem:[%s2 + $0x1a0] sm:$0xff]
    %v500 = vld [vmem:[%s2 + $0x1a8] sm:$0xff]
    %v501 = vld [vmem:[%s2 + $0x1b0] sm:$0xff]
    %v502 = vld [vmem:[%s2 + $0x1b8] sm:$0xff]
    %v503 = vld [vmem:[%s2 + $0x1c0] sm:$0xff]
    %v504 = vld [vmem:[%s2 + $0x1c8] sm:$0xff]
    %v505 = vld [vmem:[%s2 + $0x1d0] sm:$0xff]
    %v506 = vld [vmem:[%s2 + $0x1d8] sm:$0xff]
    %v507 = vld [vmem:[%s2 + $0x1e0] sm:$0xff]
    %v508 = vld [vmem:[%s2 + $0x1e8] sm:$0xff]
    %v509 = vld [vmem:[%s2 + $0x1f0] sm:$0xff]
    %v510 = vld [vmem:[%s2 + $0x1f8] sm:$0xff]
    %v511 = vld [vmem:[%s2 + $0x200] sm:$0xff]
    %v512 = vld [vmem:[%s2 + $0x208] sm:$0xff]
    %v513 = vld [vmem:[%s2 + $0x210] sm:$0xff]
    %v514 = vld [vmem:[%s2 + $0x218] sm:$0xff]
    %v515 = vld [vmem:[%s2 + $0x220] sm:$0xff]
    %v516 = vld [vmem:[%s2 + $0x228] sm:$0xff]
    %v517 = vld [vmem:[%s2 + $0x230] sm:$0xff]
    %v518 = vld [vmem:[%s2 + $0x238] sm:$0xff]
    %v519 = vld [vmem:[%s2 + $0x240] sm:$0xff]
    %v520 = vld [vmem:[%s2 + $0x248] sm:$0xff]
    %v521 = vld [vmem:[%s2 + $0x250] sm:$0xff]
    %v522 = vld [vmem:[%s2 + $0x258] sm:$0xff]
    %v523 = vld [vmem:[%s2 + $0x260] sm:$0xff]
    %v524 = vld [vmem:[%s2 + $0x268] sm:$0xff]
    %v525 = vld [vmem:[%s2 + $0x270] sm:$0xff]
    %v526 = vld [vmem:[%s2 + $0x278] sm:$0xff]
    %v527 = vld [vmem:[%s2 + $0x280] sm:$0xff]
    %v528 = vld [vmem:[%s2 + $0x288] sm:$0xff]
    %v529 = vld [vmem:[%s2 + $0x290] sm:$0xff]
    %v530 = vld [vmem:[%s2 + $0x298] sm:$0xff]
    %v531 = vld [vmem:[%s2 + $0x2a0] sm:$0xff]
    %v532 = vld [vmem:[%s2 + $0x2a8] sm:$0xff]
    %v533 = vld [vmem:[%s2 + $0x2b0] sm:$0xff]
    %v534 = vld [vmem:[%s2 + $0x2b8] sm:$0xff]
    %v535 = vld [vmem:[%s2 + $0x2c0] sm:$0xff]
    %v536 = vld [vmem:[%s2 + $0x2c8] sm:$0xff]
    %v537 = vld [vmem:[%s2 + $0x2d0] sm:$0xff]
    %v538 = vld [vmem:[%s2 + $0x2d8] sm:$0xff]
    %v539 = vld [vmem:[%s2 + $0x2e0] sm:$0xff]
    %v540 = vld [vmem:[%s2 + $0x2e8] sm:$0xff]
    %v541 = vld [vmem:[%s2 + $0x2f0] sm:$0xff]
    %v542 = vld [vmem:[%s2 + $0x2f8] sm:$0xff]
    %v543 = vld [vmem:[%s2 + $0x300] sm:$0xff]
    %v544 = vld [vmem:[%s2 + $0x308] sm:$0xff]
    %v545 = vld [vmem:[%s2 + $0x310] sm:$0xff]
    %v546 = vld [vmem:[%s3] sm:$0xff]
    %v547 = vld [vmem:[%s3 + $0x8] sm:$0xff]
    %v548 = vld [vmem:[%s3 + $0x10] sm:$0xff]
    %v549 = vld [vmem:[%s3 + $0x18] sm:$0xff]
    %v550 = vld [vmem:[%s3 + $0x20] sm:$0xff]
    %v551 = vld [vmem:[%s3 + $0x28] sm:$0xff]
    %v552 = vld [vmem:[%s3 + $0x30] sm:$0xff]
    %v553 = vld [vmem:[%s3 + $0x38] sm:$0xff]
    %v554 = vld [vmem:[%s3 + $0x40] sm:$0xff]
    %v555 = vld [vmem:[%s3 + $0x48] sm:$0xff]
    %v556 = vld [vmem:[%s3 + $0x50] sm:$0xff]
    %v557 = vld [vmem:[%s3 + $0x58] sm:$0xff]
    %vm558 = vcmask 588800
    %v560 = vsel %vm558, %v414, 0
    %v563 = vsel %vm558, %v415, 0
    %v566 = vsel %vm558, %v416, 0
    %v569 = vsel %vm558, %v417, 0
    %v572 = vsel %vm558, %v418, 0
    %v575 = vsel %vm558, %v419, 0
    %v578 = vsel %vm558, %v420, 0
    %v581 = vsel %vm558, %v421, 0
    %v584 = vsel %vm558, %v422, 0
    %v587 = vsel %vm558, %v423, 0
    %v590 = vsel %vm558, %v424, 0
    %v593 = vsel %vm558, %v425, 0
    %v596 = vsel %vm558, %v426, 0
    %v599 = vsel %vm558, %v427, 0
    %v602 = vsel %vm558, %v428, 0
    %v605 = vsel %vm558, %v429, 0
    %v608 = vsel %vm558, %v430, 0
    %v611 = vsel %vm558, %v431, 0
    %v614 = vsel %vm558, %v432, 0
    %v617 = vsel %vm558, %v433, 0
    %v620 = vsel %vm558, %v434, 0
    %v623 = vsel %vm558, %v435, 0
    %v626 = vsel %vm558, %v436, 0
    %v629 = vsel %vm558, %v437, 0
    %v632 = vsel %vm558, %v438, 0
    %v635 = vsel %vm558, %v439, 0
    %v638 = vsel %vm558, %v440, 0
    %v641 = vsel %vm558, %v441, 0
    %v644 = vsel %vm558, %v442, 0
    %v647 = vsel %vm558, %v443, 0
    %v650 = vsel %vm558, %v444, 0
    %v653 = vsel %vm558, %v445, 0
    %v656 = vsel %vm558, %v446, 0
    %658 = vmatprep.subr.mxu0 0.0
    %659 = vmatpush1.msra.mxu0 %v55
    %660 = vmatprep.subr.mxu0 0.0
    %661 = vmatpush1.msra.mxu0 %v104
    %662 = vmatprep.subr.mxu0 0.0
    %663 = vmatpush1.msra.mxu0 %v153
    %664 = vmatprep.subr.mxu0 0.0
    %665 = vmatpush1.msra.mxu0 %v202
    %666 = vmatprep.subr.mxu0 0.0
    %667 = vmatpush1.msra.mxu0 %v251
    %668 = vmatprep.subr.mxu0 0.0
    %669 = vmatpush1.msra.mxu0 %v300
    %670 = vmatprep.subr.mxu0 0.0
    %671 = vmatpush1.msra.mxu0 %v349
    %672 = vmatprep.subr.mxu0 0.0
    %673 = vmatpush1.msra.mxu0 %v398
    %674 = vmatprep.subr.mxu0 0.0
    %675 = vmatpush1.msra.mxu0 %v22
    %676 = vmatprep.subr.mxu0 0.0
    %677 = vmatpush1.msra.mxu0 0.0
    %678 = vmatprep.subr.mxu0 0.0
    %679 = vmatpush1.msra.mxu0 0.0
    %680 = vmatprep.subr.mxu0 0.0
    %681 = vmatpush1.msra.mxu0 0.0
    %682 = vmatprep.subr.mxu0 0.0
    %683 = vmatpush1.msra.mxu0 0.0
    %684 = vmatprep.subr.mxu0 0.0
    %685 = vmatpush1.msra.mxu0 0.0
    %686 = vmatprep.subr.mxu0 0.0
    %687 = vmatpush1.msra.mxu0 0.0
    %688 = vmatprep.subr.mxu0 0.0
    %689 = vmatpush1.msra.mxu0 0.0
    %690 = vmatprep.subr.mxu0 0.0
    %691 = vmatpush1.msra.mxu0 0.0
    %692 = vmatprep.subr.mxu0 0.0
    %693 = vmatpush1.msra.mxu0 0.0
    %694 = vmatprep.subr.mxu0 0.0
    %695 = vmatpush1.msra.mxu0 0.0
    %696 = vmatprep.subr.mxu0 0.0
    %697 = vmatpush1.msra.mxu0 0.0
    %698 = vmatprep.subr.mxu0 0.0
    %699 = vmatpush1.msra.mxu0 0.0
    %700 = vmatprep.subr.mxu0 0.0
    %701 = vmatpush1.msra.mxu0 0.0
    %702 = vmatprep.subr.mxu0 0.0
    %703 = vmatpush1.msra.mxu0 0.0
    %704 = vmatprep.subr.mxu0 0.0
    %705 = vmatpush1.msra.mxu0 0.0
    %706 = vmatprep.subr.mxu0 0.0
    %707 = vmatpush1.msra.mxu0 0.0
    %708 = vmatprep.subr.mxu0 0.0
    %709 = vmatpush1.msra.mxu0 0.0
    %710 = vmatprep.subr.mxu0 0.0
    %711 = vmatpush1.msra.mxu0 0.0
    %712 = vmatprep.subr.mxu0 0.0
    %713 = vmatpush1.msra.mxu0 0.0
    %714 = vmatprep.subr.mxu0 0.0
    %715 = vmatpush1.msra.mxu0 0.0
    %716 = vmatprep.subr.mxu0 0.0
    %717 = vmatpush1.msra.mxu0 0.0
    %718 = vmatprep.subr.mxu0 0.0
    %719 = vmatpush1.msra.mxu0 0.0
    %720 = vmatprep.subr.mxu0 0.0
    %721 = vmatpush1.msra.mxu0 0.0
    %722 = vmatprep.mubr.f32.mxu0 0.0
    %723 = vmatmul.mubr.f32.gmra.mrb[0].mxu0 %v560
    %v724 = vpop.f32.mrb[0].mxu0
    %v725 = vadd.f32 0.0, %v724
    %v726 = vpop.f32.mrb[0].mxu0
    %727 = vmatprep.mubr.f32.mxu0 0.0
    %728 = vmatmul.mubr.f32.gmra.mrb[0].mxu0 %v563
    %v729 = vpop.f32.mrb[0].mxu0
    %v730 = vadd.f32 0.0, %v729
    %v731 = vpop.f32.mrb[0].mxu0
    %732 = vmatprep.mubr.f32.mxu0 0.0
    %733 = vmatmul.mubr.f32.gmra.mrb[0].mxu0 %v566
    %v734 = vpop.f32.mrb[0].mxu0
    %v735 = vadd.f32 0.0, %v734
    %v736 = vpop.f32.mrb[0].mxu0
    %737 = vmatprep.mubr.f32.mxu0 0.0
    %738 = vmatmul.mubr.f32.gmra.mrb[0].mxu0 %v569
    %v739 = vpop.f32.mrb[0].mxu0
    %v740 = vadd.f32 0.0, %v739
    %v741 = vpop.f32.mrb[0].mxu0
    %742 = vmatprep.mubr.f32.mxu0 0.0
    %743 = vmatmul.mubr.f32.gmra.mrb[0].mxu0 %v572
    %v744 = vpop.f32.mrb[0].mxu0
    %v745 = vadd.f32 0.0, %v744
    %v746 = vpop.f32.mrb[0].mxu0
    %747 = vmatprep.mubr.f32.mxu0 0.0
    %748 = vmatmul.mubr.f32.gmra.mrb[0].mxu0 %v575
    %v749 = vpop.f32.mrb[0].mxu0
    %v750 = vadd.f32 0.0, %v749
    %v751 = vpop.f32.mrb[0].mxu0
    %752 = vmatprep.mubr.f32.mxu0 0.0
    %753 = vmatmul.mubr.f32.gmra.mrb[0].mxu0 %v578
    %v754 = vpop.f32.mrb[0].mxu0
    %v755 = vadd.f32 0.0, %v754
    %v756 = vpop.f32.mrb[0].mxu0
    %757 = vmatprep.mubr.f32.mxu0 0.0
    %758 = vmatmul.mubr.f32.gmra.mrb[0].mxu0 %v581
    %v759 = vpop.f32.mrb[0].mxu0
    %v760 = vadd.f32 0.0, %v759
    %v761 = vpop.f32.mrb[0].mxu0
    %762 = vmatprep.mubr.f32.mxu0 0.0
    %763 = vmatmul.mubr.f32.gmra.mrb[0].mxu0 %v584
    %v764 = vpop.f32.mrb[0].mxu0
    %v765 = vadd.f32 0.0, %v764
    %v766 = vpop.f32.mrb[0].mxu0
    %767 = vmatprep.mubr.f32.mxu0 0.0
    %768 = vmatmul.mubr.f32.gmra.mrb[0].mxu0 %v587
    %v769 = vpop.f32.mrb[0].mxu0
    %v770 = vadd.f32 0.0, %v769
    %v771 = vpop.f32.mrb[0].mxu0
    %772 = vmatprep.mubr.f32.mxu0 0.0
    %773 = vmatmul.mubr.f32.gmra.mrb[0].mxu0 %v590
    %v774 = vpop.f32.mrb[0].mxu0
    %v775 = vadd.f32 0.0, %v774
    %v776 = vpop.f32.mrb[0].mxu0
    %777 = vmatprep.mubr.f32.mxu0 0.0
    %778 = vmatmul.mubr.f32.gmra.mrb[0].mxu0 %v593
    %v779 = vpop.f32.mrb[0].mxu0
    %v780 = vadd.f32 0.0, %v779
    %v781 = vpop.f32.mrb[0].mxu0
    %782 = vmatprep.mubr.f32.mxu0 0.0
    %783 = vmatmul.mubr.f32.gmra.mrb[0].mxu0 %v596
    %v784 = vpop.f32.mrb[0].mxu0
    %v785 = vadd.f32 0.0, %v784
    %v786 = vpop.f32.mrb[0].mxu0
    %787 = vmatprep.mubr.f32.mxu0 0.0
    %788 = vmatmul.mubr.f32.gmra.mrb[0].mxu0 %v599
    %v789 = vpop.f32.mrb[0].mxu0
    %v790 = vadd.f32 0.0, %v789
    %v791 = vpop.f32.mrb[0].mxu0
    %792 = vmatprep.mubr.f32.mxu0 0.0
    %793 = vmatmul.mubr.f32.gmra.mrb[0].mxu0 %v602
    %v794 = vpop.f32.mrb[0].mxu0
    %v795 = vadd.f32 0.0, %v794
    %v796 = vpop.f32.mrb[0].mxu0
    %797 = vmatprep.mubr.f32.mxu0 0.0
    %798 = vmatmul.mubr.f32.gmra.mrb[0].mxu0 %v605
    %v799 = vpop.f32.mrb[0].mxu0
    %v800 = vadd.f32 0.0, %v799
    %v801 = vpop.f32.mrb[0].mxu0
    %802 = vmatprep.mubr.f32.mxu0 0.0
    %803 = vmatmul.mubr.f32.gmra.mrb[0].mxu0 %v608
    %v804 = vpop.f32.mrb[0].mxu0
    %v805 = vadd.f32 0.0, %v804
    %v806 = vpop.f32.mrb[0].mxu0
    %807 = vmatprep.mubr.f32.mxu0 0.0
    %808 = vmatmul.mubr.f32.gmra.mrb[0].mxu0 %v611
    %v809 = vpop.f32.mrb[0].mxu0
    %v810 = vadd.f32 0.0, %v809
    %v811 = vpop.f32.mrb[0].mxu0
    %812 = vmatprep.mubr.f32.mxu0 0.0
    %813 = vmatmul.mubr.f32.gmra.mrb[0].mxu0 %v614
    %v814 = vpop.f32.mrb[0].mxu0
    %v815 = vadd.f32 0.0, %v814
    %v816 = vpop.f32.mrb[0].mxu0
    %817 = vmatprep.mubr.f32.mxu0 0.0
    %818 = vmatmul.mubr.f32.gmra.mrb[0].mxu0 %v617
    %v819 = vpop.f32.mrb[0].mxu0
    %v820 = vadd.f32 0.0, %v819
    %v821 = vpop.f32.mrb[0].mxu0
    %822 = vmatprep.mubr.f32.mxu0 0.0
    %823 = vmatmul.mubr.f32.gmra.mrb[0].mxu0 %v620
    %v824 = vpop.f32.mrb[0].mxu0
    %v825 = vadd.f32 0.0, %v824
    %v826 = vpop.f32.mrb[0].mxu0
    %827 = vmatprep.mubr.f32.mxu0 0.0
    %828 = vmatmul.mubr.f32.gmra.mrb[0].mxu0 %v623
    %v829 = vpop.f32.mrb[0].mxu0
    %v830 = vadd.f32 0.0, %v829
    %v831 = vpop.f32.mrb[0].mxu0
    %832 = vmatprep.mubr.f32.mxu0 0.0
    %833 = vmatmul.mubr.f32.gmra.mrb[0].mxu0 %v626
    %v834 = vpop.f32.mrb[0].mxu0
    %v835 = vadd.f32 0.0, %v834
    %v836 = vpop.f32.mrb[0].mxu0
    %837 = vmatprep.mubr.f32.mxu0 0.0
    %838 = vmatmul.mubr.f32.gmra.mrb[0].mxu0 %v629
    %v839 = vpop.f32.mrb[0].mxu0
    %v840 = vadd.f32 0.0, %v839
    %v841 = vpop.f32.mrb[0].mxu0
    %842 = vmatprep.mubr.f32.mxu0 0.0
    %843 = vmatmul.mubr.f32.gmra.mrb[0].mxu0 %v632
    %v844 = vpop.f32.mrb[0].mxu0
    %v845 = vadd.f32 0.0, %v844
    %v846 = vpop.f32.mrb[0].mxu0
    %847 = vmatprep.mubr.f32.mxu0 0.0
    %848 = vmatmul.mubr.f32.gmra.mrb[0].mxu0 %v635
    %v849 = vpop.f32.mrb[0].mxu0
    %v850 = vadd.f32 0.0, %v849
    %v851 = vpop.f32.mrb[0].mxu0
    %852 = vmatprep.mubr.f32.mxu0 0.0
    %853 = vmatmul.mubr.f32.gmra.mrb[0].mxu0 %v638
    %v854 = vpop.f32.mrb[0].mxu0
    %v855 = vadd.f32 0.0, %v854
    %v856 = vpop.f32.mrb[0].mxu0
    %857 = vmatprep.mubr.f32.mxu0 0.0
    %858 = vmatmul.mubr.f32.gmra.mrb[0].mxu0 %v641
    %v859 = vpop.f32.mrb[0].mxu0
    %v860 = vadd.f32 0.0, %v859
    %v861 = vpop.f32.mrb[0].mxu0
    %862 = vmatprep.mubr.f32.mxu0 0.0
    %863 = vmatmul.mubr.f32.gmra.mrb[0].mxu0 %v644
    %v864 = vpop.f32.mrb[0].mxu0
    %v865 = vadd.f32 0.0, %v864
    %v866 = vpop.f32.mrb[0].mxu0
    %867 = vmatprep.mubr.f32.mxu0 0.0
    %868 = vmatmul.mubr.f32.gmra.mrb[0].mxu0 %v647
    %v869 = vpop.f32.mrb[0].mxu0
    %v870 = vadd.f32 0.0, %v869
    %v871 = vpop.f32.mrb[0].mxu0
    %872 = vmatprep.mubr.f32.mxu0 0.0
    %873 = vmatmul.mubr.f32.gmra.mrb[0].mxu0 %v650
    %v874 = vpop.f32.mrb[0].mxu0
    %v875 = vadd.f32 0.0, %v874
    %v876 = vpop.f32.mrb[0].mxu0
    %877 = vmatprep.mubr.f32.mxu0 0.0
    %878 = vmatmul.mubr.f32.gmra.mrb[0].mxu0 %v653
    %v879 = vpop.f32.mrb[0].mxu0
    %v880 = vadd.f32 0.0, %v879
    %v881 = vpop.f32.mrb[0].mxu0
    %882 = vmatprep.mubr.f32.mxu0 0.0
    %883 = vmatmul.mubr.f32.gmra.mrb[0].mxu0 %v656
    %v884 = vpop.f32.mrb[0].mxu0
    %v885 = vadd.f32 0.0, %v884
    %v886 = vpop.f32.mrb[0].mxu0
    %887 = vdwg.mxu0
    %v888 = vmax.f32 %v725, 0.0
    %v889 = vmax.f32 %v730, 0.0
    %v890 = vmax.f32 %v735, 0.0
    %v891 = vmax.f32 %v740, 0.0
    %v892 = vmax.f32 %v745, 0.0
    %v893 = vmax.f32 %v750, 0.0
    %v894 = vmax.f32 %v755, 0.0
    %v895 = vmax.f32 %v760, 0.0
    %v896 = vmax.f32 %v765, 0.0
    %v897 = vmax.f32 %v770, 0.0
    %v898 = vmax.f32 %v775, 0.0
    %v899 = vmax.f32 %v780, 0.0
    %v900 = vmax.f32 %v785, 0.0
    %v901 = vmax.f32 %v790, 0.0
    %v902 = vmax.f32 %v795, 0.0
    %v903 = vmax.f32 %v800, 0.0
    %v904 = vmax.f32 %v805, 0.0
    %v905 = vmax.f32 %v810, 0.0
    %v906 = vmax.f32 %v815, 0.0
    %v907 = vmax.f32 %v820, 0.0
    %v908 = vmax.f32 %v825, 0.0
    %v909 = vmax.f32 %v830, 0.0
    %v910 = vmax.f32 %v835, 0.0
    %v911 = vmax.f32 %v840, 0.0
    %v912 = vmax.f32 %v845, 0.0
    %v913 = vmax.f32 %v850, 0.0
    %v914 = vmax.f32 %v855, 0.0
    %v915 = vmax.f32 %v860, 0.0
    %v916 = vmax.f32 %v865, 0.0
    %v917 = vmax.f32 %v870, 0.0
    %v918 = vmax.f32 %v875, 0.0
    %v919 = vmax.f32 %v880, 0.0
    %v920 = vmax.f32 %v885, 0.0
    %vm921 = vcmask 64512
    %v923 = vsel %vm921, %v449, 0
    %v926 = vsel %vm921, %v452, 0
    %v929 = vsel %vm921, %v455, 0
    %v932 = vsel %vm921, %v458, 0
    %v935 = vsel %vm921, %v461, 0
    %v938 = vsel %vm921, %v464, 0
    %v941 = vsel %vm921, %v467, 0
    %v944 = vsel %vm921, %v470, 0
    %v947 = vsel %vm921, %v473, 0
    %v950 = vsel %vm921, %v476, 0
    %v953 = vsel %vm921, %v479, 0
    %v956 = vsel %vm921, %v482, 0
    %v959 = vsel %vm921, %v485, 0
    %v962 = vsel %vm921, %v488, 0
    %v965 = vsel %vm921, %v491, 0
    %v968 = vsel %vm921, %v494, 0
    %v971 = vsel %vm921, %v497, 0
    %v974 = vsel %vm921, %v500, 0
    %v977 = vsel %vm921, %v503, 0
    %v980 = vsel %vm921, %v506, 0
    %v983 = vsel %vm921, %v509, 0
    %v986 = vsel %vm921, %v512, 0
    %v989 = vsel %vm921, %v515, 0
    %v992 = vsel %vm921, %v518, 0
    %v995 = vsel %vm921, %v521, 0
    %v998 = vsel %vm921, %v524, 0
    %v1001 = vsel %vm921, %v527, 0
    %v1004 = vsel %vm921, %v530, 0
    %v1007 = vsel %vm921, %v533, 0
    %v1010 = vsel %vm921, %v536, 0
    %v1013 = vsel %vm921, %v539, 0
    %v1016 = vsel %vm921, %v542, 0
    %v1019 = vsel %vm921, %v545, 0
    %1021 = vmatprep.subr.mxu0 0.0
    %1022 = vmatpush1.msra.mxu0 %v888
    %1023 = vmatprep.subr.mxu0 0.0
    %1024 = vmatpush1.msra.mxu0 %v889
    %1025 = vmatprep.subr.mxu0 0.0
    %1026 = vmatpush1.msra.mxu0 %v890
    %1027 = vmatprep.subr.mxu0 0.0
    %1028 = vmatpush1.msra.mxu0 %v891
    %1029 = vmatprep.subr.mxu0 0.0
    %1030 = vmatpush1.msra.mxu0 %v892
    %1031 = vmatprep.subr.mxu0 0.0
    %1032 = vmatpush1.msra.mxu0 %v893
    %1033 = vmatprep.subr.mxu0 0.0
    %1034 = vmatpush1.msra.mxu0 %v894
    %1035 = vmatprep.subr.mxu0 0.0
    %1036 = vmatpush1.msra.mxu0 %v895
    %1037 = vmatprep.subr.mxu0 0.0
    %1038 = vmatpush1.msra.mxu0 %v896
    %1039 = vmatprep.subr.mxu0 0.0
    %1040 = vmatpush1.msra.mxu0 %v897
    %1041 = vmatprep.subr.mxu0 0.0
    %1042 = vmatpush1.msra.mxu0 %v898
    %1043 = vmatprep.subr.mxu0 0.0
    %1044 = vmatpush1.msra.mxu0 %v899
    %1045 = vmatprep.subr.mxu0 0.0
    %1046 = vmatpush1.msra.mxu0 %v900
    %1047 = vmatprep.subr.mxu0 0.0
    %1048 = vmatpush1.msra.mxu0 %v901
    %1049 = vmatprep.subr.mxu0 0.0
    %1050 = vmatpush1.msra.mxu0 %v902
    %1051 = vmatprep.subr.mxu0 0.0
    %1052 = vmatpush1.msra.mxu0 %v903
    %1053 = vmatprep.subr.mxu0 0.0
    %1054 = vmatpush1.msra.mxu0 %v904
    %1055 = vmatprep.subr.mxu0 0.0
    %1056 = vmatpush1.msra.mxu0 %v905
    %1057 = vmatprep.subr.mxu0 0.0
    %1058 = vmatpush1.msra.mxu0 %v906
    %1059 = vmatprep.subr.mxu0 0.0
    %1060 = vmatpush1.msra.mxu0 %v907
    %1061 = vmatprep.subr.mxu0 0.0
    %1062 = vmatpush1.msra.mxu0 %v908
    %1063 = vmatprep.subr.mxu0 0.0
    %1064 = vmatpush1.msra.mxu0 %v909
    %1065 = vmatprep.subr.mxu0 0.0
    %1066 = vmatpush1.msra.mxu0 %v910
    %1067 = vmatprep.subr.mxu0 0.0
    %1068 = vmatpush1.msra.mxu0 %v911
    %1069 = vmatprep.subr.mxu0 0.0
    %1070 = vmatpush1.msra.mxu0 %v912
    %1071 = vmatprep.subr.mxu0 0.0
    %1072 = vmatpush1.msra.mxu0 %v913
    %1073 = vmatprep.subr.mxu0 0.0
    %1074 = vmatpush1.msra.mxu0 %v914
    %1075 = vmatprep.subr.mxu0 0.0
    %1076 = vmatpush1.msra.mxu0 %v915
    %1077 = vmatprep.subr.mxu0 0.0
    %1078 = vmatpush1.msra.mxu0 %v916
    %1079 = vmatprep.subr.mxu0 0.0
    %1080 = vmatpush1.msra.mxu0 %v917
    %1081 = vmatprep.subr.mxu0 0.0
    %1082 = vmatpush1.msra.mxu0 %v918
    %1083 = vmatprep.subr.mxu0 0.0
    %1084 = vmatpush1.msra.mxu0 %v919
    %1085 = vmatprep.mubr.f32.mxu0 %v448
    %1086 = vmatmul.mubr.f32.gmra.mrb[0].mxu0 %v447
    %v1087 = vpop.f32.mrb[0].mxu0
    %v1088 = vadd.f32 0.0, %v1087
    %v1089 = vpop.f32.mrb[0].mxu0
    %1090 = vmatprep.mubr.f32.mxu0 %v451
    %1091 = vmatmul.mubr.f32.gmra.mrb[0].mxu0 %v450
    %v1092 = vpop.f32.mrb[0].mxu0
    %v1093 = vadd.f32 0.0, %v1092
    %v1094 = vpop.f32.mrb[0].mxu0
    %1095 = vmatprep.mubr.f32.mxu0 %v454
    %1096 = vmatmul.mubr.f32.gmra.mrb[0].mxu0 %v453
    %v1097 = vpop.f32.mrb[0].mxu0
    %v1098 = vadd.f32 0.0, %v1097
    %v1099 = vpop.f32.mrb[0].mxu0
    %1100 = vmatprep.mubr.f32.mxu0 %v457
    %1101 = vmatmul.mubr.f32.gmra.mrb[0].mxu0 %v456
    %v1102 = vpop.f32.mrb[0].mxu0
    %v1103 = vadd.f32 0.0, %v1102
    %v1104 = vpop.f32.mrb[0].mxu0
    %1105 = vmatprep.mubr.f32.mxu0 %v460
    %1106 = vmatmul.mubr.f32.gmra.mrb[0].mxu0 %v459
    %v1107 = vpop.f32.mrb[0].mxu0
    %v1108 = vadd.f32 0.0, %v1107
    %v1109 = vpop.f32.mrb[0].mxu0
    %1110 = vmatprep.mubr.f32.mxu0 %v463
    %1111 = vmatmul.mubr.f32.gmra.mrb[0].mxu0 %v462
    %v1112 = vpop.f32.mrb[0].mxu0
    %v1113 = vadd.f32 0.0, %v1112
    %v1114 = vpop.f32.mrb[0].mxu0
    %1115 = vmatprep.mubr.f32.mxu0 %v466
    %1116 = vmatmul.mubr.f32.gmra.mrb[0].mxu0 %v465
    %v1117 = vpop.f32.mrb[0].mxu0
    %v1118 = vadd.f32 0.0, %v1117
    %v1119 = vpop.f32.mrb[0].mxu0
    %1120 = vmatprep.mubr.f32.mxu0 %v469
    %1121 = vmatmul.mubr.f32.gmra.mrb[0].mxu0 %v468
    %v1122 = vpop.f32.mrb[0].mxu0
    %v1123 = vadd.f32 0.0, %v1122
    %v1124 = vpop.f32.mrb[0].mxu0
    %1125 = vmatprep.mubr.f32.mxu0 %v472
    %1126 = vmatmul.mubr.f32.gmra.mrb[0].mxu0 %v471
    %v1127 = vpop.f32.mrb[0].mxu0
    %v1128 = vadd.f32 0.0, %v1127
    %v1129 = vpop.f32.mrb[0].mxu0
    %1130 = vmatprep.mubr.f32.mxu0 %v475
    %1131 = vmatmul.mubr.f32.gmra.mrb[0].mxu0 %v474
    %v1132 = vpop.f32.mrb[0].mxu0
    %v1133 = vadd.f32 0.0, %v1132
    %v1134 = vpop.f32.mrb[0].mxu0
    %1135 = vmatprep.mubr.f32.mxu0 %v478
    %1136 = vmatmul.mubr.f32.gmra.mrb[0].mxu0 %v477
    %v1137 = vpop.f32.mrb[0].mxu0
    %v1138 = vadd.f32 0.0, %v1137
    %v1139 = vpop.f32.mrb[0].mxu0
    %1140 = vmatprep.mubr.f32.mxu0 %v481
    %1141 = vmatmul.mubr.f32.gmra.mrb[0].mxu0 %v480
    %v1142 = vpop.f32.mrb[0].mxu0
    %v1143 = vadd.f32 0.0, %v1142
    %v1144 = vpop.f32.mrb[0].mxu0
    %1145 = vmatprep.mubr.f32.mxu0 %v484
    %1146 = vmatmul.mubr.f32.gmra.mrb[0].mxu0 %v483
    %v1147 = vpop.f32.mrb[0].mxu0
    %v1148 = vadd.f32 0.0, %v1147
    %v1149 = vpop.f32.mrb[0].mxu0
    %1150 = vmatprep.mubr.f32.mxu0 %v487
    %1151 = vmatmul.mubr.f32.gmra.mrb[0].mxu0 %v486
    %v1152 = vpop.f32.mrb[0].mxu0
    %v1153 = vadd.f32 0.0, %v1152
    %v1154 = vpop.f32.mrb[0].mxu0
    %1155 = vmatprep.mubr.f32.mxu0 %v490
    %1156 = vmatmul.mubr.f32.gmra.mrb[0].mxu0 %v489
    %v1157 = vpop.f32.mrb[0].mxu0
    %v1158 = vadd.f32 0.0, %v1157
    %v1159 = vpop.f32.mrb[0].mxu0
    %1160 = vmatprep.mubr.f32.mxu0 %v493
    %1161 = vmatmul.mubr.f32.gmra.mrb[0].mxu0 %v492
    %v1162 = vpop.f32.mrb[0].mxu0
    %v1163 = vadd.f32 0.0, %v1162
    %v1164 = vpop.f32.mrb[0].mxu0
    %1165 = vmatprep.mubr.f32.mxu0 %v496
    %1166 = vmatmul.mubr.f32.gmra.mrb[0].mxu0 %v495
    %v1167 = vpop.f32.mrb[0].mxu0
    %v1168 = vadd.f32 0.0, %v1167
    %v1169 = vpop.f32.mrb[0].mxu0
    %1170 = vmatprep.mubr.f32.mxu0 %v499
    %1171 = vmatmul.mubr.f32.gmra.mrb[0].mxu0 %v498
    %v1172 = vpop.f32.mrb[0].mxu0
    %v1173 = vadd.f32 0.0, %v1172
    %v1174 = vpop.f32.mrb[0].mxu0
    %1175 = vmatprep.mubr.f32.mxu0 %v502
    %1176 = vmatmul.mubr.f32.gmra.mrb[0].mxu0 %v501
    %v1177 = vpop.f32.mrb[0].mxu0
    %v1178 = vadd.f32 0.0, %v1177
    %v1179 = vpop.f32.mrb[0].mxu0
    %1180 = vmatprep.mubr.f32.mxu0 %v505
    %1181 = vmatmul.mubr.f32.gmra.mrb[0].mxu0 %v504
    %v1182 = vpop.f32.mrb[0].mxu0
    %v1183 = vadd.f32 0.0, %v1182
    %v1184 = vpop.f32.mrb[0].mxu0
    %1185 = vmatprep.mubr.f32.mxu0 %v508
    %1186 = vmatmul.mubr.f32.gmra.mrb[0].mxu0 %v507
    %v1187 = vpop.f32.mrb[0].mxu0
    %v1188 = vadd.f32 0.0, %v1187
    %v1189 = vpop.f32.mrb[0].mxu0
    %1190 = vmatprep.mubr.f32.mxu0 %v511
    %1191 = vmatmul.mubr.f32.gmra.mrb[0].mxu0 %v510
    %v1192 = vpop.f32.mrb[0].mxu0
    %v1193 = vadd.f32 0.0, %v1192
    %v1194 = vpop.f32.mrb[0].mxu0
    %1195 = vmatprep.mubr.f32.mxu0 %v514
    %1196 = vmatmul.mubr.f32.gmra.mrb[0].mxu0 %v513
    %v1197 = vpop.f32.mrb[0].mxu0
    %v1198 = vadd.f32 0.0, %v1197
    %v1199 = vpop.f32.mrb[0].mxu0
    %1200 = vmatprep.mubr.f32.mxu0 %v517
    %1201 = vmatmul.mubr.f32.gmra.mrb[0].mxu0 %v516
    %v1202 = vpop.f32.mrb[0].mxu0
    %v1203 = vadd.f32 0.0, %v1202
    %v1204 = vpop.f32.mrb[0].mxu0
    %1205 = vmatprep.mubr.f32.mxu0 %v520
    %1206 = vmatmul.mubr.f32.gmra.mrb[0].mxu0 %v519
    %v1207 = vpop.f32.mrb[0].mxu0
    %v1208 = vadd.f32 0.0, %v1207
    %v1209 = vpop.f32.mrb[0].mxu0
    %1210 = vmatprep.mubr.f32.mxu0 %v523
    %1211 = vmatmul.mubr.f32.gmra.mrb[0].mxu0 %v522
    %v1212 = vpop.f32.mrb[0].mxu0
    %v1213 = vadd.f32 0.0, %v1212
    %v1214 = vpop.f32.mrb[0].mxu0
    %1215 = vmatprep.mubr.f32.mxu0 %v526
    %1216 = vmatmul.mubr.f32.gmra.mrb[0].mxu0 %v525
    %v1217 = vpop.f32.mrb[0].mxu0
    %v1218 = vadd.f32 0.0, %v1217
    %v1219 = vpop.f32.mrb[0].mxu0
    %1220 = vmatprep.mubr.f32.mxu0 %v529
    %1221 = vmatmul.mubr.f32.gmra.mrb[0].mxu0 %v528
    %v1222 = vpop.f32.mrb[0].mxu0
    %v1223 = vadd.f32 0.0, %v1222
    %v1224 = vpop.f32.mrb[0].mxu0
    %1225 = vmatprep.mubr.f32.mxu0 %v532
    %1226 = vmatmul.mubr.f32.gmra.mrb[0].mxu0 %v531
    %v1227 = vpop.f32.mrb[0].mxu0
    %v1228 = vadd.f32 0.0, %v1227
    %v1229 = vpop.f32.mrb[0].mxu0
    %1230 = vmatprep.mubr.f32.mxu0 %v535
    %1231 = vmatmul.mubr.f32.gmra.mrb[0].mxu0 %v534
    %v1232 = vpop.f32.mrb[0].mxu0
    %v1233 = vadd.f32 0.0, %v1232
    %v1234 = vpop.f32.mrb[0].mxu0
    %1235 = vmatprep.mubr.f32.mxu0 %v538
    %1236 = vmatmul.mubr.f32.gmra.mrb[0].mxu0 %v537
    %v1237 = vpop.f32.mrb[0].mxu0
    %v1238 = vadd.f32 0.0, %v1237
    %v1239 = vpop.f32.mrb[0].mxu0
    %1240 = vmatprep.mubr.f32.mxu0 %v541
    %1241 = vmatmul.mubr.f32.gmra.mrb[0].mxu0 %v540
    %v1242 = vpop.f32.mrb[0].mxu0
    %v1243 = vadd.f32 0.0, %v1242
    %v1244 = vpop.f32.mrb[0].mxu0
    %1245 = vmatprep.mubr.f32.mxu0 %v544
    %1246 = vmatmul.mubr.f32.gmra.mrb[0].mxu0 %v543
    %v1247 = vpop.f32.mrb[0].mxu0
    %v1248 = vadd.f32 0.0, %v1247
    %v1249 = vpop.f32.mrb[0].mxu0
    %1250 = vdwg.mxu0
    %1251 = vmatprep.subr.mxu0 0.0
    %1252 = vmatpush1.msra.mxu0 %v920
    %1253 = vmatprep.subr.mxu0 0.0
    %1254 = vmatpush1.msra.mxu0 0.0
    %1255 = vmatprep.subr.mxu0 0.0
    %1256 = vmatpush1.msra.mxu0 0.0
    %1257 = vmatprep.subr.mxu0 0.0
    %1258 = vmatpush1.msra.mxu0 0.0
    %1259 = vmatprep.subr.mxu0 0.0
    %1260 = vmatpush1.msra.mxu0 0.0
    %1261 = vmatprep.subr.mxu0 0.0
    %1262 = vmatpush1.msra.mxu0 0.0
    %1263 = vmatprep.subr.mxu0 0.0
    %1264 = vmatpush1.msra.mxu0 0.0
    %1265 = vmatprep.subr.mxu0 0.0
    %1266 = vmatpush1.msra.mxu0 0.0
    %1267 = vmatprep.subr.mxu0 0.0
    %1268 = vmatpush1.msra.mxu0 0.0
    %1269 = vmatprep.subr.mxu0 0.0
    %1270 = vmatpush1.msra.mxu0 0.0
    %1271 = vmatprep.subr.mxu0 0.0
    %1272 = vmatpush1.msra.mxu0 0.0
    %1273 = vmatprep.subr.mxu0 0.0
    %1274 = vmatpush1.msra.mxu0 0.0
    %1275 = vmatprep.subr.mxu0 0.0
    %1276 = vmatpush1.msra.mxu0 0.0
    %1277 = vmatprep.subr.mxu0 0.0
    %1278 = vmatpush1.msra.mxu0 0.0
    %1279 = vmatprep.subr.mxu0 0.0
    %1280 = vmatpush1.msra.mxu0 0.0
    %1281 = vmatprep.subr.mxu0 0.0
    %1282 = vmatpush1.msra.mxu0 0.0
    %1283 = vmatprep.subr.mxu0 0.0
    %1284 = vmatpush1.msra.mxu0 0.0
    %1285 = vmatprep.subr.mxu0 0.0
    %1286 = vmatpush1.msra.mxu0 0.0
    %1287 = vmatprep.subr.mxu0 0.0
    %1288 = vmatpush1.msra.mxu0 0.0
    %1289 = vmatprep.subr.mxu0 0.0
    %1290 = vmatpush1.msra.mxu0 0.0
    %1291 = vmatprep.subr.mxu0 0.0
    %1292 = vmatpush1.msra.mxu0 0.0
    %1293 = vmatprep.subr.mxu0 0.0
    %1294 = vmatpush1.msra.mxu0 0.0
    %1295 = vmatprep.subr.mxu0 0.0
    %1296 = vmatpush1.msra.mxu0 0.0
    %1297 = vmatprep.subr.mxu0 0.0
    %1298 = vmatpush1.msra.mxu0 0.0
    %1299 = vmatprep.subr.mxu0 0.0
    %1300 = vmatpush1.msra.mxu0 0.0
    %1301 = vmatprep.subr.mxu0 0.0
    %1302 = vmatpush1.msra.mxu0 0.0
    %1303 = vmatprep.subr.mxu0 0.0
    %1304 = vmatpush1.msra.mxu0 0.0
    %1305 = vmatprep.subr.mxu0 0.0
    %1306 = vmatpush1.msra.mxu0 0.0
    %1307 = vmatprep.subr.mxu0 0.0
    %1308 = vmatpush1.msra.mxu0 0.0
    %1309 = vmatprep.subr.mxu0 0.0
    %1310 = vmatpush1.msra.mxu0 0.0
    %1311 = vmatprep.subr.mxu0 0.0
    %1312 = vmatpush1.msra.mxu0 0.0
    %1313 = vmatprep.subr.mxu0 0.0
    %1314 = vmatpush1.msra.mxu0 0.0
    %1315 = vmatprep.mubr.f32.mxu0 0.0
    %1316 = vmatmul.mubr.f32.gmra.mrb[0].mxu0 %v923
    %v1317 = vpop.f32.mrb[0].mxu0
    %v1318 = vadd.f32 %v1088, %v1317
    %v1319 = vpop.f32.mrb[0].mxu0
    %1320 = vmatprep.mubr.f32.mxu0 0.0
    %1321 = vmatmul.mubr.f32.gmra.mrb[0].mxu0 %v926
    %v1322 = vpop.f32.mrb[0].mxu0
    %v1323 = vadd.f32 %v1093, %v1322
    %v1324 = vpop.f32.mrb[0].mxu0
    %1325 = vmatprep.mubr.f32.mxu0 0.0
    %1326 = vmatmul.mubr.f32.gmra.mrb[0].mxu0 %v929
    %v1327 = vpop.f32.mrb[0].mxu0
    %v1328 = vadd.f32 %v1098, %v1327
    %v1329 = vpop.f32.mrb[0].mxu0
    %1330 = vmatprep.mubr.f32.mxu0 0.0
    %1331 = vmatmul.mubr.f32.gmra.mrb[0].mxu0 %v932
    %v1332 = vpop.f32.mrb[0].mxu0
    %v1333 = vadd.f32 %v1103, %v1332
    %v1334 = vpop.f32.mrb[0].mxu0
    %1335 = vmatprep.mubr.f32.mxu0 0.0
    %1336 = vmatmul.mubr.f32.gmra.mrb[0].mxu0 %v935
    %v1337 = vpop.f32.mrb[0].mxu0
    %v1338 = vadd.f32 %v1108, %v1337
    %v1339 = vpop.f32.mrb[0].mxu0
    %1340 = vmatprep.mubr.f32.mxu0 0.0
    %1341 = vmatmul.mubr.f32.gmra.mrb[0].mxu0 %v938
    %v1342 = vpop.f32.mrb[0].mxu0
    %v1343 = vadd.f32 %v1113, %v1342
    %v1344 = vpop.f32.mrb[0].mxu0
    %1345 = vmatprep.mubr.f32.mxu0 0.0
    %1346 = vmatmul.mubr.f32.gmra.mrb[0].mxu0 %v941
    %v1347 = vpop.f32.mrb[0].mxu0
    %v1348 = vadd.f32 %v1118, %v1347
    %v1349 = vpop.f32.mrb[0].mxu0
    %1350 = vmatprep.mubr.f32.mxu0 0.0
    %1351 = vmatmul.mubr.f32.gmra.mrb[0].mxu0 %v944
    %v1352 = vpop.f32.mrb[0].mxu0
    %v1353 = vadd.f32 %v1123, %v1352
    %v1354 = vpop.f32.mrb[0].mxu0
    %1355 = vmatprep.mubr.f32.mxu0 0.0
    %1356 = vmatmul.mubr.f32.gmra.mrb[0].mxu0 %v947
    %v1357 = vpop.f32.mrb[0].mxu0
    %v1358 = vadd.f32 %v1128, %v1357
    %v1359 = vpop.f32.mrb[0].mxu0
    %1360 = vmatprep.mubr.f32.mxu0 0.0
    %1361 = vmatmul.mubr.f32.gmra.mrb[0].mxu0 %v950
    %v1362 = vpop.f32.mrb[0].mxu0
    %v1363 = vadd.f32 %v1133, %v1362
    %v1364 = vpop.f32.mrb[0].mxu0
    %1365 = vmatprep.mubr.f32.mxu0 0.0
    %1366 = vmatmul.mubr.f32.gmra.mrb[0].mxu0 %v953
    %v1367 = vpop.f32.mrb[0].mxu0
    %v1368 = vadd.f32 %v1138, %v1367
    %v1369 = vpop.f32.mrb[0].mxu0
    %1370 = vmatprep.mubr.f32.mxu0 0.0
    %1371 = vmatmul.mubr.f32.gmra.mrb[0].mxu0 %v956
    %v1372 = vpop.f32.mrb[0].mxu0
    %v1373 = vadd.f32 %v1143, %v1372
    %v1374 = vpop.f32.mrb[0].mxu0
    %1375 = vmatprep.mubr.f32.mxu0 0.0
    %1376 = vmatmul.mubr.f32.gmra.mrb[0].mxu0 %v959
    %v1377 = vpop.f32.mrb[0].mxu0
    %v1378 = vadd.f32 %v1148, %v1377
    %v1379 = vpop.f32.mrb[0].mxu0
    %1380 = vmatprep.mubr.f32.mxu0 0.0
    %1381 = vmatmul.mubr.f32.gmra.mrb[0].mxu0 %v962
    %v1382 = vpop.f32.mrb[0].mxu0
    %v1383 = vadd.f32 %v1153, %v1382
    %v1384 = vpop.f32.mrb[0].mxu0
    %1385 = vmatprep.mubr.f32.mxu0 0.0
    %1386 = vmatmul.mubr.f32.gmra.mrb[0].mxu0 %v965
    %v1387 = vpop.f32.mrb[0].mxu0
    %v1388 = vadd.f32 %v1158, %v1387
    %v1389 = vpop.f32.mrb[0].mxu0
    %1390 = vmatprep.mubr.f32.mxu0 0.0
    %1391 = vmatmul.mubr.f32.gmra.mrb[0].mxu0 %v968
    %v1392 = vpop.f32.mrb[0].mxu0
    %v1393 = vadd.f32 %v1163, %v1392
    %v1394 = vpop.f32.mrb[0].mxu0
    %1395 = vmatprep.mubr.f32.mxu0 0.0
    %1396 = vmatmul.mubr.f32.gmra.mrb[0].mxu0 %v971
    %v1397 = vpop.f32.mrb[0].mxu0
    %v1398 = vadd.f32 %v1168, %v1397
    %v1399 = vpop.f32.mrb[0].mxu0
    %1400 = vmatprep.mubr.f32.mxu0 0.0
    %1401 = vmatmul.mubr.f32.gmra.mrb[0].mxu0 %v974
    %v1402 = vpop.f32.mrb[0].mxu0
    %v1403 = vadd.f32 %v1173, %v1402
    %v1404 = vpop.f32.mrb[0].mxu0
    %1405 = vmatprep.mubr.f32.mxu0 0.0
    %1406 = vmatmul.mubr.f32.gmra.mrb[0].mxu0 %v977
    %v1407 = vpop.f32.mrb[0].mxu0
    %v1408 = vadd.f32 %v1178, %v1407
    %v1409 = vpop.f32.mrb[0].mxu0
    %1410 = vmatprep.mubr.f32.mxu0 0.0
    %1411 = vmatmul.mubr.f32.gmra.mrb[0].mxu0 %v980
    %v1412 = vpop.f32.mrb[0].mxu0
    %v1413 = vadd.f32 %v1183, %v1412
    %v1414 = vpop.f32.mrb[0].mxu0
    %1415 = vmatprep.mubr.f32.mxu0 0.0
    %1416 = vmatmul.mubr.f32.gmra.mrb[0].mxu0 %v983
    %v1417 = vpop.f32.mrb[0].mxu0
    %v1418 = vadd.f32 %v1188, %v1417
    %v1419 = vpop.f32.mrb[0].mxu0
    %1420 = vmatprep.mubr.f32.mxu0 0.0
    %1421 = vmatmul.mubr.f32.gmra.mrb[0].mxu0 %v986
    %v1422 = vpop.f32.mrb[0].mxu0
    %v1423 = vadd.f32 %v1193, %v1422
    %v1424 = vpop.f32.mrb[0].mxu0
    %1425 = vmatprep.mubr.f32.mxu0 0.0
    %1426 = vmatmul.mubr.f32.gmra.mrb[0].mxu0 %v989
    %v1427 = vpop.f32.mrb[0].mxu0
    %v1428 = vadd.f32 %v1198, %v1427
    %v1429 = vpop.f32.mrb[0].mxu0
    %1430 = vmatprep.mubr.f32.mxu0 0.0
    %1431 = vmatmul.mubr.f32.gmra.mrb[0].mxu0 %v992
    %v1432 = vpop.f32.mrb[0].mxu0
    %v1433 = vadd.f32 %v1203, %v1432
    %v1434 = vpop.f32.mrb[0].mxu0
    %1435 = vmatprep.mubr.f32.mxu0 0.0
    %1436 = vmatmul.mubr.f32.gmra.mrb[0].mxu0 %v995
    %v1437 = vpop.f32.mrb[0].mxu0
    %v1438 = vadd.f32 %v1208, %v1437
    %v1439 = vpop.f32.mrb[0].mxu0
    %1440 = vmatprep.mubr.f32.mxu0 0.0
    %1441 = vmatmul.mubr.f32.gmra.mrb[0].mxu0 %v998
    %v1442 = vpop.f32.mrb[0].mxu0
    %v1443 = vadd.f32 %v1213, %v1442
    %v1444 = vpop.f32.mrb[0].mxu0
    %1445 = vmatprep.mubr.f32.mxu0 0.0
    %1446 = vmatmul.mubr.f32.gmra.mrb[0].mxu0 %v1001
    %v1447 = vpop.f32.mrb[0].mxu0
    %v1448 = vadd.f32 %v1218, %v1447
    %v1449 = vpop.f32.mrb[0].mxu0
    %1450 = vmatprep.mubr.f32.mxu0 0.0
    %1451 = vmatmul.mubr.f32.gmra.mrb[0].mxu0 %v1004
    %v1452 = vpop.f32.mrb[0].mxu0
    %v1453 = vadd.f32 %v1223, %v1452
    %v1454 = vpop.f32.mrb[0].mxu0
    %1455 = vmatprep.mubr.f32.mxu0 0.0
    %1456 = vmatmul.mubr.f32.gmra.mrb[0].mxu0 %v1007
    %v1457 = vpop.f32.mrb[0].mxu0
    %v1458 = vadd.f32 %v1228, %v1457
    %v1459 = vpop.f32.mrb[0].mxu0
    %1460 = vmatprep.mubr.f32.mxu0 0.0
    %1461 = vmatmul.mubr.f32.gmra.mrb[0].mxu0 %v1010
    %v1462 = vpop.f32.mrb[0].mxu0
    %v1463 = vadd.f32 %v1233, %v1462
    %v1464 = vpop.f32.mrb[0].mxu0
    %1465 = vmatprep.mubr.f32.mxu0 0.0
    %1466 = vmatmul.mubr.f32.gmra.mrb[0].mxu0 %v1013
    %v1467 = vpop.f32.mrb[0].mxu0
    %v1468 = vadd.f32 %v1238, %v1467
    %v1469 = vpop.f32.mrb[0].mxu0
    %1470 = vmatprep.mubr.f32.mxu0 0.0
    %1471 = vmatmul.mubr.f32.gmra.mrb[0].mxu0 %v1016
    %v1472 = vpop.f32.mrb[0].mxu0
    %v1473 = vadd.f32 %v1243, %v1472
    %v1474 = vpop.f32.mrb[0].mxu0
    %1475 = vmatprep.mubr.f32.mxu0 0.0
    %1476 = vmatmul.mubr.f32.gmra.mrb[0].mxu0 %v1019
    %v1477 = vpop.f32.mrb[0].mxu0
    %v1478 = vadd.f32 %v1248, %v1477
    %v1479 = vpop.f32.mrb[0].mxu0
    %1480 = vdwg.mxu0
    %v1481 = vmax.f32 %v1318, 0.0
    %v1482 = vmax.f32 %v1323, 0.0
    %v1483 = vmax.f32 %v1328, 0.0
    %v1484 = vmax.f32 %v1333, 0.0
    %v1485 = vmax.f32 %v1338, 0.0
    %v1486 = vmax.f32 %v1343, 0.0
    %v1487 = vmax.f32 %v1348, 0.0
    %v1488 = vmax.f32 %v1353, 0.0
    %v1489 = vmax.f32 %v1358, 0.0
    %v1490 = vmax.f32 %v1363, 0.0
    %v1491 = vmax.f32 %v1368, 0.0
    %v1492 = vmax.f32 %v1373, 0.0
    %v1493 = vmax.f32 %v1378, 0.0
    %v1494 = vmax.f32 %v1383, 0.0
    %v1495 = vmax.f32 %v1388, 0.0
    %v1496 = vmax.f32 %v1393, 0.0
    %v1497 = vmax.f32 %v1398, 0.0
    %v1498 = vmax.f32 %v1403, 0.0
    %v1499 = vmax.f32 %v1408, 0.0
    %v1500 = vmax.f32 %v1413, 0.0
    %v1501 = vmax.f32 %v1418, 0.0
    %v1502 = vmax.f32 %v1423, 0.0
    %v1503 = vmax.f32 %v1428, 0.0
    %v1504 = vmax.f32 %v1433, 0.0
    %v1505 = vmax.f32 %v1438, 0.0
    %v1506 = vmax.f32 %v1443, 0.0
    %v1507 = vmax.f32 %v1448, 0.0
    %v1508 = vmax.f32 %v1453, 0.0
    %v1509 = vmax.f32 %v1458, 0.0
    %v1510 = vmax.f32 %v1463, 0.0
    %v1511 = vmax.f32 %v1468, 0.0
    %v1512 = vmax.f32 %v1473, 0.0
    %v1513 = vmax.f32 %v1478, 0.0
    %v1515 = vsel %vm921, %v548, 0
    %v1518 = vsel %vm921, %v551, 0
    %v1521 = vsel %vm921, %v554, 0
    %v1524 = vsel %vm921, %v557, 0
    %1526 = vmatprep.subr.mxu0 0.0
    %1527 = vmatpush1.msra.mxu0 %v1481
    %1528 = vmatprep.subr.mxu0 0.0
    %1529 = vmatpush1.msra.mxu0 %v1482
    %1530 = vmatprep.subr.mxu0 0.0
    %1531 = vmatpush1.msra.mxu0 %v1483
    %1532 = vmatprep.subr.mxu0 0.0
    %1533 = vmatpush1.msra.mxu0 %v1484
    %1534 = vmatprep.subr.mxu0 0.0
    %1535 = vmatpush1.msra.mxu0 %v1485
    %1536 = vmatprep.subr.mxu0 0.0
    %1537 = vmatpush1.msra.mxu0 %v1486
    %1538 = vmatprep.subr.mxu0 0.0
    %1539 = vmatpush1.msra.mxu0 %v1487
    %1540 = vmatprep.subr.mxu0 0.0
    %1541 = vmatpush1.msra.mxu0 %v1488
    %1542 = vmatprep.subr.mxu0 0.0
    %1543 = vmatpush1.msra.mxu0 %v1489
    %1544 = vmatprep.subr.mxu0 0.0
    %1545 = vmatpush1.msra.mxu0 %v1490
    %1546 = vmatprep.subr.mxu0 0.0
    %1547 = vmatpush1.msra.mxu0 %v1491
    %1548 = vmatprep.subr.mxu0 0.0
    %1549 = vmatpush1.msra.mxu0 %v1492
    %1550 = vmatprep.subr.mxu0 0.0
    %1551 = vmatpush1.msra.mxu0 %v1493
    %1552 = vmatprep.subr.mxu0 0.0
    %1553 = vmatpush1.msra.mxu0 %v1494
    %1554 = vmatprep.subr.mxu0 0.0
    %1555 = vmatpush1.msra.mxu0 %v1495
    %1556 = vmatprep.subr.mxu0 0.0
    %1557 = vmatpush1.msra.mxu0 %v1496
    %1558 = vmatprep.subr.mxu0 0.0
    %1559 = vmatpush1.msra.mxu0 %v1497
    %1560 = vmatprep.subr.mxu0 0.0
    %1561 = vmatpush1.msra.mxu0 %v1498
    %1562 = vmatprep.subr.mxu0 0.0
    %1563 = vmatpush1.msra.mxu0 %v1499
    %1564 = vmatprep.subr.mxu0 0.0
    %1565 = vmatpush1.msra.mxu0 %v1500
    %1566 = vmatprep.subr.mxu0 0.0
    %1567 = vmatpush1.msra.mxu0 %v1501
    %1568 = vmatprep.subr.mxu0 0.0
    %1569 = vmatpush1.msra.mxu0 %v1502
    %1570 = vmatprep.subr.mxu0 0.0
    %1571 = vmatpush1.msra.mxu0 %v1503
    %1572 = vmatprep.subr.mxu0 0.0
    %1573 = vmatpush1.msra.mxu0 %v1504
    %1574 = vmatprep.subr.mxu0 0.0
    %1575 = vmatpush1.msra.mxu0 %v1505
    %1576 = vmatprep.subr.mxu0 0.0
    %1577 = vmatpush1.msra.mxu0 %v1506
    %1578 = vmatprep.subr.mxu0 0.0
    %1579 = vmatpush1.msra.mxu0 %v1507
    %1580 = vmatprep.subr.mxu0 0.0
    %1581 = vmatpush1.msra.mxu0 %v1508
    %1582 = vmatprep.subr.mxu0 0.0
    %1583 = vmatpush1.msra.mxu0 %v1509
    %1584 = vmatprep.subr.mxu0 0.0
    %1585 = vmatpush1.msra.mxu0 %v1510
    %1586 = vmatprep.subr.mxu0 0.0
    %1587 = vmatpush1.msra.mxu0 %v1511
    %1588 = vmatprep.subr.mxu0 0.0
    %1589 = vmatpush1.msra.mxu0 %v1512
    %1590 = vmatprep.mubr.f32.mxu0 %v547
    %1591 = vmatmul.mubr.f32.gmra.mrb[0].mxu0 %v546
    %v1592 = vpop.f32.mrb[0].mxu0
    %v1593 = vadd.f32 0.0, %v1592
    %v1594 = vpop.f32.mrb[0].mxu0
    %1595 = vmatprep.mubr.f32.mxu0 %v550
    %1596 = vmatmul.mubr.f32.gmra.mrb[0].mxu0 %v549
    %v1597 = vpop.f32.mrb[0].mxu0
    %v1598 = vadd.f32 0.0, %v1597
    %v1599 = vpop.f32.mrb[0].mxu0
    %1600 = vmatprep.mubr.f32.mxu0 %v553
    %1601 = vmatmul.mubr.f32.gmra.mrb[0].mxu0 %v552
    %v1602 = vpop.f32.mrb[0].mxu0
    %v1603 = vadd.f32 0.0, %v1602
    %v1604 = vpop.f32.mrb[0].mxu0
    %1605 = vmatprep.mubr.f32.mxu0 %v556
    %1606 = vmatmul.mubr.f32.gmra.mrb[0].mxu0 %v555
    %v1607 = vpop.f32.mrb[0].mxu0
    %v1608 = vadd.f32 0.0, %v1607
    %v1609 = vpop.f32.mrb[0].mxu0
    %1610 = vdwg.mxu0
    %1611 = vmatprep.subr.mxu0 0.0
    %1612 = vmatpush1.msra.mxu0 %v1513
    %1613 = vmatprep.subr.mxu0 0.0
    %1614 = vmatpush1.msra.mxu0 0.0
    %1615 = vmatprep.subr.mxu0 0.0
    %1616 = vmatpush1.msra.mxu0 0.0
    %1617 = vmatprep.subr.mxu0 0.0
    %1618 = vmatpush1.msra.mxu0 0.0
    %1619 = vmatprep.subr.mxu0 0.0
    %1620 = vmatpush1.msra.mxu0 0.0
    %1621 = vmatprep.subr.mxu0 0.0
    %1622 = vmatpush1.msra.mxu0 0.0
    %1623 = vmatprep.subr.mxu0 0.0
    %1624 = vmatpush1.msra.mxu0 0.0
    %1625 = vmatprep.subr.mxu0 0.0
    %1626 = vmatpush1.msra.mxu0 0.0
    %1627 = vmatprep.subr.mxu0 0.0
    %1628 = vmatpush1.msra.mxu0 0.0
    %1629 = vmatprep.subr.mxu0 0.0
    %1630 = vmatpush1.msra.mxu0 0.0
    %1631 = vmatprep.subr.mxu0 0.0
    %1632 = vmatpush1.msra.mxu0 0.0
    %1633 = vmatprep.subr.mxu0 0.0
    %1634 = vmatpush1.msra.mxu0 0.0
    %1635 = vmatprep.subr.mxu0 0.0
    %1636 = vmatpush1.msra.mxu0 0.0
    %1637 = vmatprep.subr.mxu0 0.0
    %1638 = vmatpush1.msra.mxu0 0.0
    %1639 = vmatprep.subr.mxu0 0.0
    %1640 = vmatpush1.msra.mxu0 0.0
    %1641 = vmatprep.subr.mxu0 0.0
    %1642 = vmatpush1.msra.mxu0 0.0
    %1643 = vmatprep.subr.mxu0 0.0
    %1644 = vmatpush1.msra.mxu0 0.0
    %1645 = vmatprep.subr.mxu0 0.0
    %1646 = vmatpush1.msra.mxu0 0.0
    %1647 = vmatprep.subr.mxu0 0.0
    %1648 = vmatpush1.msra.mxu0 0.0
    %1649 = vmatprep.subr.mxu0 0.0
    %1650 = vmatpush1.msra.mxu0 0.0
    %1651 = vmatprep.subr.mxu0 0.0
    %1652 = vmatpush1.msra.mxu0 0.0
    %1653 = vmatprep.subr.mxu0 0.0
    %1654 = vmatpush1.msra.mxu0 0.0
    %1655 = vmatprep.subr.mxu0 0.0
    %1656 = vmatpush1.msra.mxu0 0.0
    %1657 = vmatprep.subr.mxu0 0.0
    %1658 = vmatpush1.msra.mxu0 0.0
    %1659 = vmatprep.subr.mxu0 0.0
    %1660 = vmatpush1.msra.mxu0 0.0
    %1661 = vmatprep.subr.mxu0 0.0
    %1662 = vmatpush1.msra.mxu0 0.0
    %1663 = vmatprep.subr.mxu0 0.0
    %1664 = vmatpush1.msra.mxu0 0.0
    %1665 = vmatprep.subr.mxu0 0.0
    %1666 = vmatpush1.msra.mxu0 0.0
    %1667 = vmatprep.subr.mxu0 0.0
    %1668 = vmatpush1.msra.mxu0 0.0
    %1669 = vmatprep.subr.mxu0 0.0
    %1670 = vmatpush1.msra.mxu0 0.0
    %1671 = vmatprep.subr.mxu0 0.0
    %1672 = vmatpush1.msra.mxu0 0.0
    %1673 = vmatprep.subr.mxu0 0.0
    %1674 = vmatpush1.msra.mxu0 0.0
    %1675 = vmatprep.mubr.f32.mxu0 0.0
    %1676 = vmatmul.mubr.f32.gmra.mrb[0].mxu0 %v1515
    %v1677 = vpop.f32.mrb[0].mxu0
    %v1678 = vadd.f32 %v1593, %v1677
    %v1679 = vpop.f32.mrb[0].mxu0
    %1680 = vmatprep.mubr.f32.mxu0 0.0
    %1681 = vmatmul.mubr.f32.gmra.mrb[0].mxu0 %v1518
    %v1682 = vpop.f32.mrb[0].mxu0
    %v1683 = vadd.f32 %v1598, %v1682
    %v1684 = vpop.f32.mrb[0].mxu0
    %1685 = vmatprep.mubr.f32.mxu0 0.0
    %1686 = vmatmul.mubr.f32.gmra.mrb[0].mxu0 %v1521
    %v1687 = vpop.f32.mrb[0].mxu0
    %v1688 = vadd.f32 %v1603, %v1687
    %v1689 = vpop.f32.mrb[0].mxu0
    %1690 = vmatprep.mubr.f32.mxu0 0.0
    %1691 = vmatmul.mubr.f32.gmra.mrb[0].mxu0 %v1524
    %v1692 = vpop.f32.mrb[0].mxu0
    %v1693 = vadd.f32 %v1608, %v1692
    %v1694 = vpop.f32.mrb[0].mxu0
    %1695 = vdwg.mxu0
    %1696 = vst [vmem:[#allocation2] sm:$0xff] %v1678
    %1697 = vst [vmem:[#allocation2 + $0x8] sm:$0xff] %v1683
    %1698 = vst [vmem:[#allocation2 + $0x10] sm:$0xff] %v1688
    %1699 = vst [vmem:[#allocation2 + $0x18] sm:$0xff] %v1693
    // Predicated region
    $region18: #{multi_network_forward.1} parent=1 // pred_check
      _
    $region19: #{multi_network_forward.1} parent=1 // pred_check_branch
      %1701 = sbr.rel (0) target = $region21
    $region20: #{multi_network_forward.1} parent=1 // pred_region
      %s1703 = ssub.s32 512, 512
      %1704 = vsyncadd [#allocation3], %s1703
      %s1705 = sshll.u32 [#allocation2], 4
      %s1706 = int_to_ptr.vmem [resolvable:$true] %s1705
      %1711 = dma.vmem_to_hbm [thread:$0]  %s1706, 512, %s4, [#allocation3], 128, 128, 8
    $region21: #{multi_network_forward.1} parent=1 // pred_fallthru
      _
    // Predicated region
    $region22: #{multi_network_forward.1} parent=1 // pred_check
      _
    $region23: #{multi_network_forward.1} parent=1 // pred_check_branch
      %1713 = sbr.rel (0) target = $region25
    $region24: #{multi_network_forward.1} parent=1 // pred_region
      %1714 = dma.done [#allocation3], 512
    $region25: #{multi_network_forward.1} parent=1 // pred_fallthru
      _
    %1715 = vsyncpa [#allocation3], 1

</llo_original>
